<compile_context>
chip_gen: v7x
topology: tpu7x:2x2x1
jax: 0.10.0
libtpu: 0.0.40
codegen_flags: <defaults>
</compile_context>

<pallas_src>
import math

import jax
import jax.numpy as jnp
from jax.experimental import pallas as pl
from jax.experimental.pallas import tpu as pltpu

# ---------------- static hyper-parameters (mirror the module __init__) -------
MEM_SLOTS = 4
HEAD_SIZE = 8
NUM_HEADS = 2
MEM_SIZE = HEAD_SIZE * NUM_HEADS            # 16
KEY_SIZE = HEAD_SIZE                        # 8  (key_size=None -> head_size)
VALUE_SIZE = HEAD_SIZE                      # 8
NUM_GATES = 2 * MEM_SIZE                    # 32 (gate_style='unit')
INPUT_SIZE = 12
PAD_IN = 16                                 # input feature dim zero-padded 12 -> 16
ATTN_MLP_LAYERS = 2                         # torch uses [Linear]*L -> SHARED weights
NUM_BLOCKS = 1
FORGET_BIAS = 1.0                           # nn.Parameter init values (scalars)
INPUT_BIAS = 0.0
SEQ_LEN = 8
BATCH = 2
LN_EPS = 1e-5

HK = NUM_HEADS * KEY_SIZE                   # 16
HV = NUM_HEADS * VALUE_SIZE                 # 16

# ---------------- packed parameter slab layout (static, 128-lane dense) ------
LANES = 128
# shelf 0 : rows 0:16  -> fused weight matrices (shared contraction dim = 16)
R_W = 0
C_WCOMBO = 0                                # (16, 80) = [ wi | wi@[wq|wk|wv] | wq ]
C_WMLP = 80                                 # (16, 16)
C_WKV = 96                                  # (16, 32) = [ wk | wv ]
# shelves 1-3 : one 8-row shelf per bias/vector row (8-aligned loads)
R_BIAS = 16                                 # row 16 : [ b_combo(80) | bmlp(16) | bkv(32) ]
R_BGATE = 24                                # row 24 : fused gate bias (128)
R_VEC = 32                                  # row 32 : [ g1 | b1 | g2 | b2 | wrl ] (5 x 16)
# shelf 4 : block-diagonal gate weight (80, 128)
R_WGATE = 40
PSLAB_ROWS = R_WGATE + MEM_SLOTS * MEM_SIZE + MEM_SIZE     # 40 + 64 + 16 = 120


# ---------------- host-side parameter fusion + packing (call ONCE) -----------
def prepare_params(p):
    """Fuse + pack every parameter into ONE lane-dense (120, 128) f32 slab.

    Call once at parameter-init time, NOT inside the per-step forward, so the
    ~20 pad/concat/set ops never sit on the per-call critical path."""
    f = lambda a: jnp.asarray(a, jnp.float32)
    wi, bi = f(p["wi"]), f(p["bi"])
    wq, bq = f(p["wq"]), f(p["bq"])
    wk, bk = f(p["wk"]), f(p["bk"])
    wv, bv = f(p["wv"]), f(p["bv"])
    wmlp, bmlp = f(p["wmlp"]), f(p["bmlp"])
    g1, b1, g2, b2 = f(p["g1"]), f(p["b1"]), f(p["g2"]), f(p["b2"])
    wrl = f(p["wrl"])
    wlin, blin = f(p["wlin"]), f(p["blin"])
    wg, bg = f(p["wg"]), f(p["bg"])

    S, M, G = MEM_SLOTS, MEM_SIZE, NUM_GATES

    # zero-pad the input projector rows 12 -> 16 (8-aligned contraction dim)
    wi_p = jnp.zeros((PAD_IN, M), jnp.float32).at[:INPUT_SIZE].set(wi)

    # fused first matmul:
    #   [x ; memory] @ [ wi | wi@[wq|wk|wv] | wq ]
    #     -> inp, inp_{q,k,v} (== (x@wi+bi)@w? + b?), mem_q  in ONE MXU round.
    wqkv = jnp.concatenate([wq, wk, wv], axis=-1)                      # (16, 48)
    bqkv = jnp.concatenate([bq, bk, bv], axis=-1)                      # (1, 48)
    w_combo = jnp.concatenate([wi_p, wi_p @ wqkv, wq], axis=-1)        # (16, 80)
    b_combo = jnp.concatenate([bi, bi @ wqkv + bqkv, bq], axis=-1)     # (1, 80)
    wkv = jnp.concatenate([wk, wv], axis=-1)                           # (16, 32)
    bkv = jnp.concatenate([bk, bv], axis=-1)                           # (1, 32)

    # block-diagonal GroupLinear weight with the RepeatLinear output weight and
    # every gate bias folded in:
    #   [tanh(mem) flat | pooled relu(w*inp)] (B, 80) @ w_gate (80, 128) + b_gate
    w_gate = jnp.zeros((S * M + M, S * G), jnp.float32)
    for s in range(S):
        w_gate = w_gate.at[s * M:(s + 1) * M, s * G:(s + 1) * G].set(wg[s])
        w_gate = w_gate.at[S * M:, s * G:(s + 1) * G].set(wlin)
    half_bias = jnp.where(jnp.arange(G) < M, INPUT_BIAS, FORGET_BIAS)  # (G,)
    b_gate = (bg + blin + half_bias[None, :]).reshape(1, S * G)        # (1, 128)

    slab = jnp.zeros((PSLAB_ROWS, LANES), jnp.float32)
    slab = slab.at[R_W:R_W + PAD_IN, C_WCOMBO:C_WCOMBO + 80].set(w_combo)
    slab = slab.at[R_W:R_W + PAD_IN, C_WMLP:C_WMLP + M].set(wmlp)
    slab = slab.at[R_W:R_W + PAD_IN, C_WKV:C_WKV + 2 * HK].set(wkv)
    slab = slab.at[R_BIAS, C_WCOMBO:C_WCOMBO + 80].set(b_combo[0])
    slab = slab.at[R_BIAS, C_WMLP:C_WMLP + M].set(bmlp[0])
    slab = slab.at[R_BIAS, C_WKV:C_WKV + 2 * HK].set(bkv[0])
    slab = slab.at[R_BGATE, :].set(b_gate[0])
    slab = slab.at[R_VEC, 0:16].set(g1[0])
    slab = slab.at[R_VEC, 16:32].set(b1[0])
    slab = slab.at[R_VEC, 32:48].set(g2[0])
    slab = slab.at[R_VEC, 48:64].set(b2[0])
    slab = slab.at[R_VEC, 64:80].set(wrl[0])
    slab = slab.at[R_WGATE:R_WGATE + S * M + M, :].set(w_gate)
    return slab


# ---------------- Pallas kernel ------------------------------------------------
def make_kernel(B, T):
    S, M, G = MEM_SLOTS, MEM_SIZE, NUM_GATES
    H, K, V = NUM_HEADS, KEY_SIZE, VALUE_SIZE
    BS, BT = B * S, B * T

    def kernel(x_ref, mem_ref, p_ref, out_ref):
        # ---- unpack the lane-dense parameter slab (5 full-width loads) ----
        wrow = p_ref[R_W:R_W + PAD_IN, :]                     # (16, 128)
        w_combo = wrow[:, C_WCOMBO:C_WCOMBO + 80]
        wmlp = wrow[:, C_WMLP:C_WMLP + M]
        wkv = wrow[:, C_WKV:C_WKV + 2 * HK]
        brow = p_ref[R_BIAS:R_BIAS + 1, :]                    # (1, 128)
        b_combo = brow[:, C_WCOMBO:C_WCOMBO + 80]
        bmlp = brow[:, C_WMLP:C_WMLP + M]
        bkv = brow[:, C_WKV:C_WKV + 2 * HK]
        b_gate = p_ref[R_BGATE:R_BGATE + 1, :]                # (1, 128)
        vrow = p_ref[R_VEC:R_VEC + 1, :]                      # (1, 128)
        g1, b1 = vrow[:, 0:16], vrow[:, 16:32]
        g2, b2 = vrow[:, 32:48], vrow[:, 48:64]
        wrl = vrow[:, 64:80]
        w_gate = p_ref[R_WGATE:R_WGATE + S * M + M, :]        # (80, 128)

        def dot(a, b):
            return jnp.dot(a, b, preferred_element_type=jnp.float32)

        def layer_norm(v, g, be):
            # single pass: sum and sum-of-squares are independent reductions
            s1 = jnp.sum(v, axis=-1, keepdims=True)
            s2 = jnp.sum(v * v, axis=-1, keepdims=True)
            mu = s1 * (1.0 / M)
            var = s2 * (1.0 / M) - mu * mu
            return (v - mu) * jax.lax.rsqrt(var + LN_EPS) * g + be

        def softmax_last(v):
            mx = jnp.max(v, axis=-1, keepdims=True)
            e = jnp.exp(v - mx)
            # approx=False keeps the 5e-4 accuracy budget (approx=True loses ~1e-3).
            return e * pl.reciprocal(jnp.sum(e, axis=-1, keepdims=True), approx=False)

        def attention(q2, n_q, k2, v2, n_kv):
            # pre-projected q/k/v; torch applies NO 1/sqrt(d) scaling -> none here.
            q = q2.reshape(B, n_q, H * K)
            k = k2.reshape(B, n_kv, H * K)
            v = v2.reshape(B, n_kv, H * V)
            outs, attn_sum = [], None
            for h in range(H):                                # H == 2: tiny static loop
                s = jnp.einsum("bqd,bkd->bqk",
                               q[:, :, h * K:(h + 1) * K], k[:, :, h * K:(h + 1) * K],
                               preferred_element_type=jnp.float32)
                p = softmax_last(s)
                attn_sum = p if attn_sum is None else attn_sum + p
                outs.append(jnp.einsum("bqk,bkd->bqd", p, v[:, :, h * V:(h + 1) * V],
                                       preferred_element_type=jnp.float32))
            out = jnp.concatenate(outs, axis=-1).reshape(B * n_q, H * V)
            attn = (attn_sum * (1.0 / H)).reshape(B * n_q, n_kv)
            return out, attn

        x2 = x_ref[...]                          # (B*T, 16) zero-padded input
        mem0 = mem_ref[...]                      # (B*S, 16) original memory

        # ---- one fused projection matmul (inp, inp q/k/v, memory q) ----
        lhs = jnp.concatenate([x2, mem0], axis=0)        # (BT+BS, 16)
        proj = dot(lhs, w_combo) + b_combo               # (BT+BS, 80)
        inp = proj[0:BT, 0:M]                            # input_projector(x)
        q_inp = proj[0:BT, M:M + HK]
        k_inp = proj[0:BT, M + HK:M + 2 * HK]
        v_inp = proj[0:BT, M + 2 * HK:M + 3 * HK]
        q_mem = proj[BT:BT + BS, M + 3 * HK:M + 3 * HK + HK]

        # ---- attend_over_memory (num_blocks == 1) : K/V from projected inputs ----
        attended, attn_in = attention(q_mem, S, k_inp, v_inp, T)
        mem = layer_norm(mem0 + attended, g1, b1)
        mlp = mem
        for _ in range(ATTN_MLP_LAYERS):                 # shared Linear weights
            mlp = jnp.maximum(dot(mlp, wmlp) + bmlp, 0.0)
        next_mem_pre = layer_norm(mem + mlp, g2, b2)     # (B*S, M)

        # ---- gates: ONE block-diagonal matmul, ORIGINAL memory (as in torch) ----
        gp = jnp.maximum(wrl * inp, 0.0)                 # RepeatLinear: relu(w*x)
        gp = jnp.mean(gp.reshape(B, T, M), axis=1)       # mean over seq -> (B, M)
        mem_t3 = jnp.tanh(mem0).reshape(B, S, M)
        gate_lhs = jnp.concatenate([mem_t3[:, s, :] for s in range(S)] + [gp],
                                   axis=-1)              # (B, S*M + M) = (B, 80)
        gsig = jax.nn.sigmoid(dot(gate_lhs, w_gate) + b_gate)   # (B, 128); all biases pre-folded
        pre_t3 = jnp.tanh(next_mem_pre).reshape(B, S, M)
        mem03 = mem0.reshape(B, S, M)
        nm_slots = [gsig[:, s * G:s * G + M] * pre_t3[:, s, :]
                    + gsig[:, s * G + M:(s + 1) * G] * mem03[:, s, :]
                    for s in range(S)]                   # S == 4: tiny static loop
        next_mem = jnp.stack(nm_slots, axis=1).reshape(BS, M)

        # ---- read-out attention: q <- inputs, k/v <- next_memory ----
        kv_nm = dot(next_mem, wkv) + bkv                 # (B*S, 32)
        hx, attn_out = attention(q_inp, T, kv_nm[:, 0:HK], kv_nm[:, HK:2 * HK], S)

        # ---- lane-dense output slab: two full-width unmasked stores ----
        out_ref[0:BS, :] = jnp.concatenate(
            [next_mem, attn_in, jnp.zeros((BS, LANES - M - T), jnp.float32)], axis=-1)
        out_ref[BS:BS + BT, :] = jnp.concatenate(
            [hx, attn_out, jnp.zeros((BT, LANES - M - S), jnp.float32)], axis=-1)

    return kernel


# ---------------- wrapper -------------------------------------------------------
def relational_memory_forward(inputs, memory, pslab, encoder_padding_mask=None):
    """Equivalent of RelationalMemory.forward(inputs, memory, mask, parallel=True).

    `pslab` is the packed parameter slab from prepare_params() (built once).
    encoder_padding_mask is accepted for API parity but unused (the masking
    code is commented out in the reference torch implementation)."""
    del encoder_padding_mask
    B, T, _ = inputs.shape
    S, M = MEM_SLOTS, MEM_SIZE
    BS, BT = B * S, B * T

    x2 = inputs.reshape(BT, INPUT_SIZE).astype(jnp.float32)
    x2 = jnp.pad(x2, ((0, 0), (0, PAD_IN - INPUT_SIZE)))          # 12 -> 16 lanes
    mem2 = memory.reshape(BS, M).astype(jnp.float32)

    vmem = pl.BlockSpec(memory_space=pltpu.MemorySpace.VMEM)
    out = pl.pallas_call(
        make_kernel(B, T),
        out_shape=jax.ShapeDtypeStruct((BS + BT, LANES), jnp.float32),
        in_specs=[vmem, vmem, vmem],
        out_specs=vmem,
    )(x2, mem2, pslab)

    next_mem = out[0:BS, 0:M].reshape(B, S, M)
    attn_in = out[0:BS, M:M + T].reshape(B, S, T)
    hx = out[BS:BS + BT, 0:M].reshape(B, T, M)
    attn_out = out[BS:BS + BT, M:M + S].reshape(B, T, S)

    logits = next_mem.reshape(B, -1)        # (B, mem_slots * mem_size)
    memory_out = None                       # matches the torch code
    return logits, memory_out, next_mem, hx, [attn_in, attn_out]


# ---------------- deterministic parameter init ----------------------------------
def init_params(key):
    ks = jax.random.split(key, 16)

    def unif(k, shape, a):
        return jax.random.uniform(k, shape, jnp.float32, -a, a)

    a_in = 1.0 / math.sqrt(INPUT_SIZE)
    a_m = 1.0 / math.sqrt(MEM_SIZE)
    a_g = 1.0 / math.sqrt(NUM_GATES)
    return {
        "wi": unif(ks[0], (INPUT_SIZE, MEM_SIZE), a_in),
        "bi": unif(ks[1], (1, MEM_SIZE), a_in),
        "wq": unif(ks[2], (MEM_SIZE, KEY_SIZE * NUM_HEADS), a_m),
        "bq": unif(ks[3], (1, KEY_SIZE * NUM_HEADS), a_m),
        "wk": unif(ks[4], (MEM_SIZE, KEY_SIZE * NUM_HEADS), a_m),
        "bk": unif(ks[5], (1, KEY_SIZE * NUM_HEADS), a_m),
        "wv": unif(ks[6], (MEM_SIZE, VALUE_SIZE * NUM_HEADS), a_m),
        "bv": unif(ks[7], (1, VALUE_SIZE * NUM_HEADS), a_m),
        "wmlp": unif(ks[8], (MEM_SIZE, MEM_SIZE), a_m),
        "bmlp": unif(ks[9], (1, MEM_SIZE), a_m),
        "g1": jnp.ones((1, MEM_SIZE), jnp.float32),
        "b1": jnp.zeros((1, MEM_SIZE), jnp.float32),
        "g2": jnp.ones((1, MEM_SIZE), jnp.float32),
        "b2": jnp.zeros((1, MEM_SIZE), jnp.float32),
        "wrl": jax.random.normal(ks[10], (1, MEM_SIZE), jnp.float32),
        "wlin": unif(ks[11], (MEM_SIZE, NUM_GATES), a_m),
        "blin": unif(ks[12], (1, NUM_GATES), a_m),
        "wg": unif(ks[13], (MEM_SLOTS, MEM_SIZE, NUM_GATES), a_g),
        "bg": unif(ks[14], (MEM_SLOTS, NUM_GATES), a_g),
    }


# ---------------- independent pure-JAX reference (mirrors the torch structure) ---
def _reference_step(x, mem0, p):
    def ln(v, g, b):
        mu = jnp.mean(v, axis=-1, keepdims=True)
        var = jnp.mean((v - mu) ** 2, axis=-1, keepdims=True)
        return (v - mu) / jnp.sqrt(var + LN_EPS) * g + b

    def mha(inp, mem_):
        q = mem_ @ p["wq"] + p["bq"]
        k = inp @ p["wk"] + p["bk"]
        v = inp @ p["wv"] + p["bv"]
        qh = q.reshape(-1, NUM_HEADS, KEY_SIZE).transpose(1, 0, 2)
        kh = k.reshape(-1, NUM_HEADS, KEY_SIZE).transpose(1, 0, 2)
        vh = v.reshape(-1, NUM_HEADS, VALUE_SIZE).transpose(1, 0, 2)
        scores = jax.nn.softmax(qh @ kh.transpose(0, 2, 1), axis=-1)
        out = (scores @ vh).transpose(1, 0, 2).reshape(-1, NUM_HEADS * VALUE_SIZE)
        return out, jnp.mean(scores, axis=0)

    inp = x @ p["wi"] + p["bi"]
    mem = mem0
    for _ in range(NUM_BLOCKS):
        attended, attn_in = mha(inp, mem)
        mem = ln(mem + attended, p["g1"], p["b1"])
        mlp = mem
        for _ in range(ATTN_MLP_LAYERS):
            mlp = jax.nn.relu(mlp @ p["wmlp"] + p["bmlp"])
        mem = ln(mem + mlp, p["g2"], p["b2"])
    mem_tanh = jnp.tanh(mem0)
    gi = jnp.mean(jax.nn.relu(p["wrl"] * inp), axis=0, keepdims=True)
    gi = gi @ p["wlin"] + p["blin"]
    gm = jnp.einsum("sm,smg->sg", mem_tanh, p["wg"]) + p["bg"]
    gates = gm + gi
    ig = jax.nn.sigmoid(gates[:, :MEM_SIZE] + INPUT_BIAS)
    fg = jax.nn.sigmoid(gates[:, MEM_SIZE:] + FORGET_BIAS)
    next_mem = ig * jnp.tanh(mem) + fg * mem0
    hx, attn_out = mha(next_mem, inp)
    return next_mem, hx, attn_in, attn_out


def reference_forward(inputs, memory, params):
    nm, hx, ai, ao = jax.vmap(lambda x, m: _reference_step(x, m, params))(inputs, memory)
    return nm.reshape(inputs.shape[0], -1), nm, hx, ai, ao


# ---------------- main -----------------------------------------------------------
if __name__ == "__main__":
    key = jax.random.PRNGKey(0)
    kx, kp = jax.random.split(key)

    params = init_params(kp)
    pslab = prepare_params(params)          # fused + packed ONCE, outside the jitted forward
    inputs = jax.random.normal(kx, (BATCH, SEQ_LEN, INPUT_SIZE), jnp.float32)

    # initial_state(): identity over slots, zero-padded to mem_size.
    eye = jnp.eye(MEM_SLOTS, dtype=jnp.float32)
    pad = jnp.zeros((MEM_SLOTS, MEM_SIZE - MEM_SLOTS), jnp.float32)
    memory = jnp.broadcast_to(jnp.concatenate([eye, pad], axis=-1),
                              (BATCH, MEM_SLOTS, MEM_SIZE))

    fwd = jax.jit(relational_memory_forward)
    logits, memory_out, next_mem, hx, (attn_in, attn_out) = fwd(inputs, memory, pslab)
    jax.block_until_ready((logits, next_mem, hx, attn_in, attn_out))

    # sanity check against an independent pure-JAX reference.
    # tolerance 5e-4: the host-side weight fusion (wi@wqkv, block-diag gates)
    # legally reassociates f32 sums, adding ~1e-6..1e-5 of benign drift.
    r_logits, r_nm, r_hx, r_ai, r_ao = reference_forward(inputs, memory, params)
    for got, want in ((logits, r_logits), (next_mem, r_nm), (hx, r_hx),
                      (attn_in, r_ai), (attn_out, r_ao)):
        assert got.shape == want.shape, (got.shape, want.shape)
        assert bool(jnp.all(jnp.isfinite(got)))
        err = float(jnp.max(jnp.abs(got - want)))
        assert err < 5e-4, f"max abs err {err}"

    print("KERNEL_OK")
</pallas_src>

<mosaic_0001>
module attributes {stable_mosaic.version = 11 : i64} {
  func.func @kernel(%arg0: memref<16x16xf32, #tpu.memory_space<vmem>>, %arg1: memref<8x16xf32, #tpu.memory_space<vmem>>, %arg2: memref<120x128xf32, #tpu.memory_space<vmem>>, %arg3: memref<24x128xf32, #tpu.memory_space<vmem>>) attributes {dimension_semantics = [], scalar_prefetch = 0 : i64, scratch_operands = 0 : i64, tpu.core_type = #tpu.core_type<tc>} {
    %c0 = arith.constant 0 : index
    %c0_0 = arith.constant 0 : index
    %0 = vector.load %arg2[%c0, %c0_0] : memref<120x128xf32, #tpu.memory_space<vmem>>, vector<16x128xf32>
    %1 = vector.extract_strided_slice %0 {offsets = [0, 0], sizes = [16, 80], strides = [1, 1]} : vector<16x128xf32> to vector<16x80xf32>
    %2 = vector.extract_strided_slice %0 {offsets = [0, 80], sizes = [16, 16], strides = [1, 1]} : vector<16x128xf32> to vector<16x16xf32>
    %3 = vector.extract_strided_slice %0 {offsets = [0, 96], sizes = [16, 32], strides = [1, 1]} : vector<16x128xf32> to vector<16x32xf32>
    %c16 = arith.constant 16 : index
    %c0_1 = arith.constant 0 : index
    %4 = vector.load %arg2[%c16, %c0_1] : memref<120x128xf32, #tpu.memory_space<vmem>>, vector<1x128xf32>
    %5 = vector.extract_strided_slice %4 {offsets = [0, 0], sizes = [1, 80], strides = [1, 1]} : vector<1x128xf32> to vector<1x80xf32>
    %6 = vector.extract_strided_slice %4 {offsets = [0, 80], sizes = [1, 16], strides = [1, 1]} : vector<1x128xf32> to vector<1x16xf32>
    %7 = vector.extract_strided_slice %4 {offsets = [0, 96], sizes = [1, 32], strides = [1, 1]} : vector<1x128xf32> to vector<1x32xf32>
    %c24 = arith.constant 24 : index
    %c0_2 = arith.constant 0 : index
    %8 = vector.load %arg2[%c24, %c0_2] : memref<120x128xf32, #tpu.memory_space<vmem>>, vector<1x128xf32>
    %c32 = arith.constant 32 : index
    %c0_3 = arith.constant 0 : index
    %9 = vector.load %arg2[%c32, %c0_3] : memref<120x128xf32, #tpu.memory_space<vmem>>, vector<1x128xf32>
    %10 = vector.extract_strided_slice %9 {offsets = [0, 0], sizes = [1, 16], strides = [1, 1]} : vector<1x128xf32> to vector<1x16xf32>
    %11 = vector.extract_strided_slice %9 {offsets = [0, 16], sizes = [1, 16], strides = [1, 1]} : vector<1x128xf32> to vector<1x16xf32>
    %12 = vector.extract_strided_slice %9 {offsets = [0, 32], sizes = [1, 16], strides = [1, 1]} : vector<1x128xf32> to vector<1x16xf32>
    %13 = vector.extract_strided_slice %9 {offsets = [0, 48], sizes = [1, 16], strides = [1, 1]} : vector<1x128xf32> to vector<1x16xf32>
    %14 = vector.extract_strided_slice %9 {offsets = [0, 64], sizes = [1, 16], strides = [1, 1]} : vector<1x128xf32> to vector<1x16xf32>
    %c40 = arith.constant 40 : index
    %c0_4 = arith.constant 0 : index
    %15 = vector.load %arg2[%c40, %c0_4] : memref<120x128xf32, #tpu.memory_space<vmem>>, vector<80x128xf32>
    %c0_5 = arith.constant 0 : index
    %c0_6 = arith.constant 0 : index
    %16 = vector.load %arg0[%c0_5, %c0_6] : memref<16x16xf32, #tpu.memory_space<vmem>>, vector<16x16xf32>
    %c0_7 = arith.constant 0 : index
    %c0_8 = arith.constant 0 : index
    %17 = vector.load %arg1[%c0_7, %c0_8] : memref<8x16xf32, #tpu.memory_space<vmem>>, vector<8x16xf32>
    %18 = tpu.concatenate %16, %17 in 0 : vector<16x16xf32>, vector<8x16xf32> -> vector<24x16xf32>
    %cst = arith.constant dense<0.000000e+00> : vector<24x80xf32>
    %19 = tpu.matmul %18, %1, %cst {dimension_numbers = #tpu.dot_dimension_numbers<[1], [0], [0], [1], [0, 0, 1, 1], [], []>} : vector<24x16xf32>, vector<16x80xf32>, vector<24x80xf32> -> vector<24x80xf32>
    %20 = vector.broadcast %5 : vector<1x80xf32> to vector<24x80xf32>
    %21 = arith.addf %19, %20 : vector<24x80xf32>
    %22 = vector.extract_strided_slice %21 {offsets = [0, 0], sizes = [16, 16], strides = [1, 1]} : vector<24x80xf32> to vector<16x16xf32>
    %23 = vector.extract_strided_slice %21 {offsets = [0, 16], sizes = [16, 16], strides = [1, 1]} : vector<24x80xf32> to vector<16x16xf32>
    %24 = vector.extract_strided_slice %21 {offsets = [0, 32], sizes = [16, 16], strides = [1, 1]} : vector<24x80xf32> to vector<16x16xf32>
    %25 = vector.extract_strided_slice %21 {offsets = [0, 48], sizes = [16, 16], strides = [1, 1]} : vector<24x80xf32> to vector<16x16xf32>
    %26 = vector.extract_strided_slice %21 {offsets = [16, 64], sizes = [8, 16], strides = [1, 1]} : vector<24x80xf32> to vector<8x16xf32>
    %27 = vector.shape_cast %26 : vector<8x16xf32> to vector<2x4x16xf32>
    %28 = vector.shape_cast %24 : vector<16x16xf32> to vector<2x8x16xf32>
    %29 = vector.shape_cast %25 : vector<16x16xf32> to vector<2x8x16xf32>
    %30 = vector.extract_strided_slice %27 {offsets = [0, 0, 0], sizes = [2, 4, 8], strides = [1, 1, 1]} : vector<2x4x16xf32> to vector<2x4x8xf32>
    %31 = vector.extract_strided_slice %28 {offsets = [0, 0, 0], sizes = [2, 8, 8], strides = [1, 1, 1]} : vector<2x8x16xf32> to vector<2x8x8xf32>
    "tpu.trace_start"() <{level = 10 : i32, message = "bqd,bkd->bqk"}> : () -> ()
    %cst_9 = arith.constant dense<0.000000e+00> : vector<2x4x8xf32>
    %32 = tpu.matmul %30, %31, %cst_9 {dimension_numbers = #tpu.dot_dimension_numbers<[2], [2], [1], [1], [0, 0, 0, 1, 1, 1], [0], [0]>} : vector<2x4x8xf32>, vector<2x8x8xf32>, vector<2x4x8xf32> -> vector<2x4x8xf32>
    "tpu.trace_stop"() : () -> ()
    %cst_10 = arith.constant dense<0xFF800000> : vector<2x4xf32>
    %33 = vector.multi_reduction <maximumf>, %32, %cst_10 [2] : vector<2x4x8xf32> to vector<2x4xf32>
    %34 = vector.shape_cast %33 : vector<2x4xf32> to vector<2x4x1xf32>
    %35 = vector.broadcast %34 : vector<2x4x1xf32> to vector<2x4x8xf32>
    %36 = arith.subf %32, %35 : vector<2x4x8xf32>
    %37 = math.exp %36 : vector<2x4x8xf32>
    %cst_11 = arith.constant dense<0.000000e+00> : vector<2x4xf32>
    %38 = vector.multi_reduction <add>, %37, %cst_11 [2] : vector<2x4x8xf32> to vector<2x4xf32>
    %39 = vector.shape_cast %38 : vector<2x4xf32> to vector<2x4x1xf32>
    %40 = tpu.reciprocal %39 : vector<2x4x1xf32> -> vector<2x4x1xf32>
    %41 = vector.broadcast %40 : vector<2x4x1xf32> to vector<2x4x8xf32>
    %42 = arith.mulf %37, %41 : vector<2x4x8xf32>
    %43 = vector.extract_strided_slice %29 {offsets = [0, 0, 0], sizes = [2, 8, 8], strides = [1, 1, 1]} : vector<2x8x16xf32> to vector<2x8x8xf32>
    "tpu.trace_start"() <{level = 10 : i32, message = "bqk,bkd->bqd"}> : () -> ()
    %cst_12 = arith.constant dense<0.000000e+00> : vector<2x4x8xf32>
    %44 = tpu.matmul %42, %43, %cst_12 {dimension_numbers = #tpu.dot_dimension_numbers<[2], [1], [1], [2], [0, 0, 0, 1, 1, 2], [0], [0]>} : vector<2x4x8xf32>, vector<2x8x8xf32>, vector<2x4x8xf32> -> vector<2x4x8xf32>
    "tpu.trace_stop"() : () -> ()
    %45 = vector.extract_strided_slice %27 {offsets = [0, 0, 8], sizes = [2, 4, 8], strides = [1, 1, 1]} : vector<2x4x16xf32> to vector<2x4x8xf32>
    %46 = vector.extract_strided_slice %28 {offsets = [0, 0, 8], sizes = [2, 8, 8], strides = [1, 1, 1]} : vector<2x8x16xf32> to vector<2x8x8xf32>
    "tpu.trace_start"() <{level = 10 : i32, message = "bqd,bkd->bqk"}> : () -> ()
    %cst_13 = arith.constant dense<0.000000e+00> : vector<2x4x8xf32>
    %47 = tpu.matmul %45, %46, %cst_13 {dimension_numbers = #tpu.dot_dimension_numbers<[2], [2], [1], [1], [0, 0, 0, 1, 1, 1], [0], [0]>} : vector<2x4x8xf32>, vector<2x8x8xf32>, vector<2x4x8xf32> -> vector<2x4x8xf32>
    "tpu.trace_stop"() : () -> ()
    %cst_14 = arith.constant dense<0xFF800000> : vector<2x4xf32>
    %48 = vector.multi_reduction <maximumf>, %47, %cst_14 [2] : vector<2x4x8xf32> to vector<2x4xf32>
    %49 = vector.shape_cast %48 : vector<2x4xf32> to vector<2x4x1xf32>
    %50 = vector.broadcast %49 : vector<2x4x1xf32> to vector<2x4x8xf32>
    %51 = arith.subf %47, %50 : vector<2x4x8xf32>
    %52 = math.exp %51 : vector<2x4x8xf32>
    %cst_15 = arith.constant dense<0.000000e+00> : vector<2x4xf32>
    %53 = vector.multi_reduction <add>, %52, %cst_15 [2] : vector<2x4x8xf32> to vector<2x4xf32>
    %54 = vector.shape_cast %53 : vector<2x4xf32> to vector<2x4x1xf32>
    %55 = tpu.reciprocal %54 : vector<2x4x1xf32> -> vector<2x4x1xf32>
    %56 = vector.broadcast %55 : vector<2x4x1xf32> to vector<2x4x8xf32>
    %57 = arith.mulf %52, %56 : vector<2x4x8xf32>
    %58 = arith.addf %42, %57 : vector<2x4x8xf32>
    %59 = vector.extract_strided_slice %29 {offsets = [0, 0, 8], sizes = [2, 8, 8], strides = [1, 1, 1]} : vector<2x8x16xf32> to vector<2x8x8xf32>
    "tpu.trace_start"() <{level = 10 : i32, message = "bqk,bkd->bqd"}> : () -> ()
    %cst_16 = arith.constant dense<0.000000e+00> : vector<2x4x8xf32>
    %60 = tpu.matmul %57, %59, %cst_16 {dimension_numbers = #tpu.dot_dimension_numbers<[2], [1], [1], [2], [0, 0, 0, 1, 1, 2], [0], [0]>} : vector<2x4x8xf32>, vector<2x8x8xf32>, vector<2x4x8xf32> -> vector<2x4x8xf32>
    "tpu.trace_stop"() : () -> ()
    %61 = tpu.concatenate %44, %60 in 2 : vector<2x4x8xf32>, vector<2x4x8xf32> -> vector<2x4x16xf32>
    %62 = vector.shape_cast %61 : vector<2x4x16xf32> to vector<8x16xf32>
    %cst_17 = arith.constant 5.000000e-01 : f32
    %63 = vector.broadcast %cst_17 : f32 to vector<2x4x8xf32>
    %64 = arith.mulf %58, %63 : vector<2x4x8xf32>
    %65 = vector.shape_cast %64 : vector<2x4x8xf32> to vector<8x8xf32>
    %66 = arith.addf %17, %62 : vector<8x16xf32>
    %cst_18 = arith.constant dense<0.000000e+00> : vector<8xf32>
    %67 = vector.multi_reduction <add>, %66, %cst_18 [1] : vector<8x16xf32> to vector<8xf32>
    %68 = vector.shape_cast %67 : vector<8xf32> to vector<8x1xf32>
    %69 = arith.mulf %66, %66 : vector<8x16xf32>
    %cst_19 = arith.constant dense<0.000000e+00> : vector<8xf32>
    %70 = vector.multi_reduction <add>, %69, %cst_19 [1] : vector<8x16xf32> to vector<8xf32>
    %71 = vector.shape_cast %70 : vector<8xf32> to vector<8x1xf32>
    %cst_20 = arith.constant 6.250000e-02 : f32
    %72 = vector.broadcast %cst_20 : f32 to vector<8x1xf32>
    %73 = arith.mulf %68, %72 : vector<8x1xf32>
    %cst_21 = arith.constant 6.250000e-02 : f32
    %74 = vector.broadcast %cst_21 : f32 to vector<8x1xf32>
    %75 = arith.mulf %71, %74 : vector<8x1xf32>
    %76 = arith.mulf %73, %73 : vector<8x1xf32>
    %77 = arith.subf %75, %76 : vector<8x1xf32>
    %78 = vector.broadcast %73 : vector<8x1xf32> to vector<8x16xf32>
    %79 = arith.subf %66, %78 : vector<8x16xf32>
    %cst_22 = arith.constant 9.99999974E-6 : f32
    %80 = vector.broadcast %cst_22 : f32 to vector<8x1xf32>
    %81 = arith.addf %77, %80 : vector<8x1xf32>
    %82 = math.rsqrt %81 : vector<8x1xf32>
    %83 = vector.broadcast %82 : vector<8x1xf32> to vector<8x16xf32>
    %84 = arith.mulf %79, %83 : vector<8x16xf32>
    %85 = vector.broadcast %10 : vector<1x16xf32> to vector<8x16xf32>
    %86 = arith.mulf %84, %85 : vector<8x16xf32>
    %87 = vector.broadcast %11 : vector<1x16xf32> to vector<8x16xf32>
    %88 = arith.addf %86, %87 : vector<8x16xf32>
    %cst_23 = arith.constant dense<0.000000e+00> : vector<8x16xf32>
    %89 = tpu.matmul %88, %2, %cst_23 {dimension_numbers = #tpu.dot_dimension_numbers<[1], [0], [0], [1], [0, 0, 1, 1], [], []>} : vector<8x16xf32>, vector<16x16xf32>, vector<8x16xf32> -> vector<8x16xf32>
    %90 = vector.broadcast %6 : vector<1x16xf32> to vector<8x16xf32>
    %91 = arith.addf %89, %90 : vector<8x16xf32>
    %cst_24 = arith.constant 0.000000e+00 : f32
    %92 = vector.broadcast %cst_24 : f32 to vector<8x16xf32>
    %93 = arith.maximumf %91, %92 : vector<8x16xf32>
    %cst_25 = arith.constant dense<0.000000e+00> : vector<8x16xf32>
    %94 = tpu.matmul %93, %2, %cst_25 {dimension_numbers = #tpu.dot_dimension_numbers<[1], [0], [0], [1], [0, 0, 1, 1], [], []>} : vector<8x16xf32>, vector<16x16xf32>, vector<8x16xf32> -> vector<8x16xf32>
    %95 = vector.broadcast %6 : vector<1x16xf32> to vector<8x16xf32>
    %96 = arith.addf %94, %95 : vector<8x16xf32>
    %cst_26 = arith.constant 0.000000e+00 : f32
    %97 = vector.broadcast %cst_26 : f32 to vector<8x16xf32>
    %98 = arith.maximumf %96, %97 : vector<8x16xf32>
    %99 = arith.addf %88, %98 : vector<8x16xf32>
    %cst_27 = arith.constant dense<0.000000e+00> : vector<8xf32>
    %100 = vector.multi_reduction <add>, %99, %cst_27 [1] : vector<8x16xf32> to vector<8xf32>
    %101 = vector.shape_cast %100 : vector<8xf32> to vector<8x1xf32>
    %102 = arith.mulf %99, %99 : vector<8x16xf32>
    %cst_28 = arith.constant dense<0.000000e+00> : vector<8xf32>
    %103 = vector.multi_reduction <add>, %102, %cst_28 [1] : vector<8x16xf32> to vector<8xf32>
    %104 = vector.shape_cast %103 : vector<8xf32> to vector<8x1xf32>
    %cst_29 = arith.constant 6.250000e-02 : f32
    %105 = vector.broadcast %cst_29 : f32 to vector<8x1xf32>
    %106 = arith.mulf %101, %105 : vector<8x1xf32>
    %cst_30 = arith.constant 6.250000e-02 : f32
    %107 = vector.broadcast %cst_30 : f32 to vector<8x1xf32>
    %108 = arith.mulf %104, %107 : vector<8x1xf32>
    %109 = arith.mulf %106, %106 : vector<8x1xf32>
    %110 = arith.subf %108, %109 : vector<8x1xf32>
    %111 = vector.broadcast %106 : vector<8x1xf32> to vector<8x16xf32>
    %112 = arith.subf %99, %111 : vector<8x16xf32>
    %cst_31 = arith.constant 9.99999974E-6 : f32
    %113 = vector.broadcast %cst_31 : f32 to vector<8x1xf32>
    %114 = arith.addf %110, %113 : vector<8x1xf32>
    %115 = math.rsqrt %114 : vector<8x1xf32>
    %116 = vector.broadcast %115 : vector<8x1xf32> to vector<8x16xf32>
    %117 = arith.mulf %112, %116 : vector<8x16xf32>
    %118 = vector.broadcast %12 : vector<1x16xf32> to vector<8x16xf32>
    %119 = arith.mulf %117, %118 : vector<8x16xf32>
    %120 = vector.broadcast %13 : vector<1x16xf32> to vector<8x16xf32>
    %121 = arith.addf %119, %120 : vector<8x16xf32>
    %122 = vector.broadcast %14 : vector<1x16xf32> to vector<16x16xf32>
    %123 = arith.mulf %122, %22 : vector<16x16xf32>
    %cst_32 = arith.constant 0.000000e+00 : f32
    %124 = vector.broadcast %cst_32 : f32 to vector<16x16xf32>
    %125 = arith.maximumf %123, %124 : vector<16x16xf32>
    %126 = vector.shape_cast %125 : vector<16x16xf32> to vector<2x8x16xf32>
    %cst_33 = arith.constant dense<0.000000e+00> : vector<2x16xf32>
    %127 = vector.multi_reduction <add>, %126, %cst_33 [1] : vector<2x8x16xf32> to vector<2x16xf32>
    %cst_34 = arith.constant 8.000000e+00 : f32
    %128 = vector.broadcast %cst_34 : f32 to vector<2x16xf32>
    %129 = arith.divf %127, %128 : vector<2x16xf32>
    %130 = math.tanh %17 : vector<8x16xf32>
    %131 = vector.shape_cast %130 : vector<8x16xf32> to vector<2x4x16xf32>
    %132 = vector.extract_strided_slice %131 {offsets = [0, 0, 0], sizes = [2, 1, 16], strides = [1, 1, 1]} : vector<2x4x16xf32> to vector<2x1x16xf32>
    %133 = vector.shape_cast %132 : vector<2x1x16xf32> to vector<2x16xf32>
    %134 = vector.extract_strided_slice %131 {offsets = [0, 1, 0], sizes = [2, 1, 16], strides = [1, 1, 1]} : vector<2x4x16xf32> to vector<2x1x16xf32>
    %135 = vector.shape_cast %134 : vector<2x1x16xf32> to vector<2x16xf32>
    %136 = vector.extract_strided_slice %131 {offsets = [0, 2, 0], sizes = [2, 1, 16], strides = [1, 1, 1]} : vector<2x4x16xf32> to vector<2x1x16xf32>
    %137 = vector.shape_cast %136 : vector<2x1x16xf32> to vector<2x16xf32>
    %138 = vector.extract_strided_slice %131 {offsets = [0, 3, 0], sizes = [2, 1, 16], strides = [1, 1, 1]} : vector<2x4x16xf32> to vector<2x1x16xf32>
    %139 = vector.shape_cast %138 : vector<2x1x16xf32> to vector<2x16xf32>
    %140 = tpu.concatenate %133, %135, %137, %139, %129 in 1 : vector<2x16xf32>, vector<2x16xf32>, vector<2x16xf32>, vector<2x16xf32>, vector<2x16xf32> -> vector<2x80xf32>
    %cst_35 = arith.constant dense<0.000000e+00> : vector<2x128xf32>
    %141 = tpu.matmul %140, %15, %cst_35 {dimension_numbers = #tpu.dot_dimension_numbers<[1], [0], [0], [1], [0, 0, 1, 1], [], []>} : vector<2x80xf32>, vector<80x128xf32>, vector<2x128xf32> -> vector<2x128xf32>
    %142 = vector.broadcast %8 : vector<1x128xf32> to vector<2x128xf32>
    %143 = arith.addf %141, %142 : vector<2x128xf32>
    %144 = arith.negf %143 : vector<2x128xf32>
    %145 = math.exp %144 : vector<2x128xf32>
    %cst_36 = arith.constant 1.000000e+00 : f32
    %146 = vector.broadcast %cst_36 : f32 to vector<2x128xf32>
    %147 = arith.addf %146, %145 : vector<2x128xf32>
    %148 = arith.divf %146, %147 : vector<2x128xf32>
    %149 = math.tanh %121 : vector<8x16xf32>
    %150 = vector.shape_cast %149 : vector<8x16xf32> to vector<2x4x16xf32>
    %151 = vector.shape_cast %17 : vector<8x16xf32> to vector<2x4x16xf32>
    %152 = vector.extract_strided_slice %148 {offsets = [0, 0], sizes = [2, 16], strides = [1, 1]} : vector<2x128xf32> to vector<2x16xf32>
    %153 = vector.extract_strided_slice %150 {offsets = [0, 0, 0], sizes = [2, 1, 16], strides = [1, 1, 1]} : vector<2x4x16xf32> to vector<2x1x16xf32>
    %154 = vector.shape_cast %153 : vector<2x1x16xf32> to vector<2x16xf32>
    %155 = arith.mulf %152, %154 : vector<2x16xf32>
    %156 = vector.extract_strided_slice %148 {offsets = [0, 16], sizes = [2, 16], strides = [1, 1]} : vector<2x128xf32> to vector<2x16xf32>
    %157 = vector.extract_strided_slice %151 {offsets = [0, 0, 0], sizes = [2, 1, 16], strides = [1, 1, 1]} : vector<2x4x16xf32> to vector<2x1x16xf32>
    %158 = vector.shape_cast %157 : vector<2x1x16xf32> to vector<2x16xf32>
    %159 = arith.mulf %156, %158 : vector<2x16xf32>
    %160 = arith.addf %155, %159 : vector<2x16xf32>
    %161 = vector.extract_strided_slice %148 {offsets = [0, 32], sizes = [2, 16], strides = [1, 1]} : vector<2x128xf32> to vector<2x16xf32>
    %162 = vector.extract_strided_slice %150 {offsets = [0, 1, 0], sizes = [2, 1, 16], strides = [1, 1, 1]} : vector<2x4x16xf32> to vector<2x1x16xf32>
    %163 = vector.shape_cast %162 : vector<2x1x16xf32> to vector<2x16xf32>
    %164 = arith.mulf %161, %163 : vector<2x16xf32>
    %165 = vector.extract_strided_slice %148 {offsets = [0, 48], sizes = [2, 16], strides = [1, 1]} : vector<2x128xf32> to vector<2x16xf32>
    %166 = vector.extract_strided_slice %151 {offsets = [0, 1, 0], sizes = [2, 1, 16], strides = [1, 1, 1]} : vector<2x4x16xf32> to vector<2x1x16xf32>
    %167 = vector.shape_cast %166 : vector<2x1x16xf32> to vector<2x16xf32>
    %168 = arith.mulf %165, %167 : vector<2x16xf32>
    %169 = arith.addf %164, %168 : vector<2x16xf32>
    %170 = vector.extract_strided_slice %148 {offsets = [0, 64], sizes = [2, 16], strides = [1, 1]} : vector<2x128xf32> to vector<2x16xf32>
    %171 = vector.extract_strided_slice %150 {offsets = [0, 2, 0], sizes = [2, 1, 16], strides = [1, 1, 1]} : vector<2x4x16xf32> to vector<2x1x16xf32>
    %172 = vector.shape_cast %171 : vector<2x1x16xf32> to vector<2x16xf32>
    %173 = arith.mulf %170, %172 : vector<2x16xf32>
    %174 = vector.extract_strided_slice %148 {offsets = [0, 80], sizes = [2, 16], strides = [1, 1]} : vector<2x128xf32> to vector<2x16xf32>
    %175 = vector.extract_strided_slice %151 {offsets = [0, 2, 0], sizes = [2, 1, 16], strides = [1, 1, 1]} : vector<2x4x16xf32> to vector<2x1x16xf32>
    %176 = vector.shape_cast %175 : vector<2x1x16xf32> to vector<2x16xf32>
    %177 = arith.mulf %174, %176 : vector<2x16xf32>
    %178 = arith.addf %173, %177 : vector<2x16xf32>
    %179 = vector.extract_strided_slice %148 {offsets = [0, 96], sizes = [2, 16], strides = [1, 1]} : vector<2x128xf32> to vector<2x16xf32>
    %180 = vector.extract_strided_slice %150 {offsets = [0, 3, 0], sizes = [2, 1, 16], strides = [1, 1, 1]} : vector<2x4x16xf32> to vector<2x1x16xf32>
    %181 = vector.shape_cast %180 : vector<2x1x16xf32> to vector<2x16xf32>
    %182 = arith.mulf %179, %181 : vector<2x16xf32>
    %183 = vector.extract_strided_slice %148 {offsets = [0, 112], sizes = [2, 16], strides = [1, 1]} : vector<2x128xf32> to vector<2x16xf32>
    %184 = vector.extract_strided_slice %151 {offsets = [0, 3, 0], sizes = [2, 1, 16], strides = [1, 1, 1]} : vector<2x4x16xf32> to vector<2x1x16xf32>
    %185 = vector.shape_cast %184 : vector<2x1x16xf32> to vector<2x16xf32>
    %186 = arith.mulf %183, %185 : vector<2x16xf32>
    %187 = arith.addf %182, %186 : vector<2x16xf32>
    %188 = vector.shape_cast %160 : vector<2x16xf32> to vector<2x1x16xf32>
    %189 = vector.shape_cast %169 : vector<2x16xf32> to vector<2x1x16xf32>
    %190 = vector.shape_cast %178 : vector<2x16xf32> to vector<2x1x16xf32>
    %191 = vector.shape_cast %187 : vector<2x16xf32> to vector<2x1x16xf32>
    %192 = tpu.concatenate %188, %189, %190, %191 in 1 : vector<2x1x16xf32>, vector<2x1x16xf32>, vector<2x1x16xf32>, vector<2x1x16xf32> -> vector<2x4x16xf32>
    %193 = vector.shape_cast %192 : vector<2x4x16xf32> to vector<8x16xf32>
    %cst_37 = arith.constant dense<0.000000e+00> : vector<8x32xf32>
    %194 = tpu.matmul %193, %3, %cst_37 {dimension_numbers = #tpu.dot_dimension_numbers<[1], [0], [0], [1], [0, 0, 1, 1], [], []>} : vector<8x16xf32>, vector<16x32xf32>, vector<8x32xf32> -> vector<8x32xf32>
    %195 = vector.broadcast %7 : vector<1x32xf32> to vector<8x32xf32>
    %196 = arith.addf %194, %195 : vector<8x32xf32>
    %197 = vector.extract_strided_slice %196 {offsets = [0, 0], sizes = [8, 16], strides = [1, 1]} : vector<8x32xf32> to vector<8x16xf32>
    %198 = vector.extract_strided_slice %196 {offsets = [0, 16], sizes = [8, 16], strides = [1, 1]} : vector<8x32xf32> to vector<8x16xf32>
    %199 = vector.shape_cast %23 : vector<16x16xf32> to vector<2x8x16xf32>
    %200 = vector.shape_cast %197 : vector<8x16xf32> to vector<2x4x16xf32>
    %201 = vector.shape_cast %198 : vector<8x16xf32> to vector<2x4x16xf32>
    %202 = vector.extract_strided_slice %199 {offsets = [0, 0, 0], sizes = [2, 8, 8], strides = [1, 1, 1]} : vector<2x8x16xf32> to vector<2x8x8xf32>
    %203 = vector.extract_strided_slice %200 {offsets = [0, 0, 0], sizes = [2, 4, 8], strides = [1, 1, 1]} : vector<2x4x16xf32> to vector<2x4x8xf32>
    "tpu.trace_start"() <{level = 10 : i32, message = "bqd,bkd->bqk"}> : () -> ()
    %cst_38 = arith.constant dense<0.000000e+00> : vector<2x8x4xf32>
    %204 = tpu.matmul %202, %203, %cst_38 {dimension_numbers = #tpu.dot_dimension_numbers<[2], [2], [1], [1], [0, 0, 0, 1, 1, 1], [0], [0]>} : vector<2x8x8xf32>, vector<2x4x8xf32>, vector<2x8x4xf32> -> vector<2x8x4xf32>
    "tpu.trace_stop"() : () -> ()
    %cst_39 = arith.constant dense<0xFF800000> : vector<2x8xf32>
    %205 = vector.multi_reduction <maximumf>, %204, %cst_39 [2] : vector<2x8x4xf32> to vector<2x8xf32>
    %206 = vector.shape_cast %205 : vector<2x8xf32> to vector<2x8x1xf32>
    %207 = vector.broadcast %206 : vector<2x8x1xf32> to vector<2x8x4xf32>
    %208 = arith.subf %204, %207 : vector<2x8x4xf32>
    %209 = math.exp %208 : vector<2x8x4xf32>
    %cst_40 = arith.constant dense<0.000000e+00> : vector<2x8xf32>
    %210 = vector.multi_reduction <add>, %209, %cst_40 [2] : vector<2x8x4xf32> to vector<2x8xf32>
    %211 = vector.shape_cast %210 : vector<2x8xf32> to vector<2x8x1xf32>
    %212 = tpu.reciprocal %211 : vector<2x8x1xf32> -> vector<2x8x1xf32>
    %213 = vector.broadcast %212 : vector<2x8x1xf32> to vector<2x8x4xf32>
    %214 = arith.mulf %209, %213 : vector<2x8x4xf32>
    %215 = vector.extract_strided_slice %201 {offsets = [0, 0, 0], sizes = [2, 4, 8], strides = [1, 1, 1]} : vector<2x4x16xf32> to vector<2x4x8xf32>
    "tpu.trace_start"() <{level = 10 : i32, message = "bqk,bkd->bqd"}> : () -> ()
    %cst_41 = arith.constant dense<0.000000e+00> : vector<2x8x8xf32>
    %216 = tpu.matmul %214, %215, %cst_41 {dimension_numbers = #tpu.dot_dimension_numbers<[2], [1], [1], [2], [0, 0, 0, 1, 1, 2], [0], [0]>} : vector<2x8x4xf32>, vector<2x4x8xf32>, vector<2x8x8xf32> -> vector<2x8x8xf32>
    "tpu.trace_stop"() : () -> ()
    %217 = vector.extract_strided_slice %199 {offsets = [0, 0, 8], sizes = [2, 8, 8], strides = [1, 1, 1]} : vector<2x8x16xf32> to vector<2x8x8xf32>
    %218 = vector.extract_strided_slice %200 {offsets = [0, 0, 8], sizes = [2, 4, 8], strides = [1, 1, 1]} : vector<2x4x16xf32> to vector<2x4x8xf32>
    "tpu.trace_start"() <{level = 10 : i32, message = "bqd,bkd->bqk"}> : () -> ()
    %cst_42 = arith.constant dense<0.000000e+00> : vector<2x8x4xf32>
    %219 = tpu.matmul %217, %218, %cst_42 {dimension_numbers = #tpu.dot_dimension_numbers<[2], [2], [1], [1], [0, 0, 0, 1, 1, 1], [0], [0]>} : vector<2x8x8xf32>, vector<2x4x8xf32>, vector<2x8x4xf32> -> vector<2x8x4xf32>
    "tpu.trace_stop"() : () -> ()
    %cst_43 = arith.constant dense<0xFF800000> : vector<2x8xf32>
    %220 = vector.multi_reduction <maximumf>, %219, %cst_43 [2] : vector<2x8x4xf32> to vector<2x8xf32>
    %221 = vector.shape_cast %220 : vector<2x8xf32> to vector<2x8x1xf32>
    %222 = vector.broadcast %221 : vector<2x8x1xf32> to vector<2x8x4xf32>
    %223 = arith.subf %219, %222 : vector<2x8x4xf32>
    %224 = math.exp %223 : vector<2x8x4xf32>
    %cst_44 = arith.constant dense<0.000000e+00> : vector<2x8xf32>
    %225 = vector.multi_reduction <add>, %224, %cst_44 [2] : vector<2x8x4xf32> to vector<2x8xf32>
    %226 = vector.shape_cast %225 : vector<2x8xf32> to vector<2x8x1xf32>
    %227 = tpu.reciprocal %226 : vector<2x8x1xf32> -> vector<2x8x1xf32>
    %228 = vector.broadcast %227 : vector<2x8x1xf32> to vector<2x8x4xf32>
    %229 = arith.mulf %224, %228 : vector<2x8x4xf32>
    %230 = arith.addf %214, %229 : vector<2x8x4xf32>
    %231 = vector.extract_strided_slice %201 {offsets = [0, 0, 8], sizes = [2, 4, 8], strides = [1, 1, 1]} : vector<2x4x16xf32> to vector<2x4x8xf32>
    "tpu.trace_start"() <{level = 10 : i32, message = "bqk,bkd->bqd"}> : () -> ()
    %cst_45 = arith.constant dense<0.000000e+00> : vector<2x8x8xf32>
    %232 = tpu.matmul %229, %231, %cst_45 {dimension_numbers = #tpu.dot_dimension_numbers<[2], [1], [1], [2], [0, 0, 0, 1, 1, 2], [0], [0]>} : vector<2x8x4xf32>, vector<2x4x8xf32>, vector<2x8x8xf32> -> vector<2x8x8xf32>
    "tpu.trace_stop"() : () -> ()
    %233 = tpu.concatenate %216, %232 in 2 : vector<2x8x8xf32>, vector<2x8x8xf32> -> vector<2x8x16xf32>
    %234 = vector.shape_cast %233 : vector<2x8x16xf32> to vector<16x16xf32>
    %cst_46 = arith.constant 5.000000e-01 : f32
    %235 = vector.broadcast %cst_46 : f32 to vector<2x8x4xf32>
    %236 = arith.mulf %230, %235 : vector<2x8x4xf32>
    %237 = vector.shape_cast %236 : vector<2x8x4xf32> to vector<16x4xf32>
    %cst_47 = arith.constant 0.000000e+00 : f32
    %238 = vector.broadcast %cst_47 : f32 to vector<8x104xf32>
    %239 = tpu.concatenate %193, %65, %238 in 1 : vector<8x16xf32>, vector<8x8xf32>, vector<8x104xf32> -> vector<8x128xf32>
    %c0_48 = arith.constant 0 : index
    %c0_49 = arith.constant 0 : index
    %240 = vector.load %arg3[%c0_48, %c0_49] : memref<24x128xf32, #tpu.memory_space<vmem>>, vector<8x128xf32>
    tpu.vector_store %arg3[%c0_48, %c0_49], %239 {strides = array<i32>} : memref<24x128xf32, #tpu.memory_space<vmem>>, vector<8x128xf32>,
    %cst_50 = arith.constant 0.000000e+00 : f32
    %241 = vector.broadcast %cst_50 : f32 to vector<16x108xf32>
    %242 = tpu.concatenate %234, %237, %241 in 1 : vector<16x16xf32>, vector<16x4xf32>, vector<16x108xf32> -> vector<16x128xf32>
    %c8 = arith.constant 8 : index
    %c0_51 = arith.constant 0 : index
    %243 = vector.load %arg3[%c8, %c0_51] : memref<24x128xf32, #tpu.memory_space<vmem>>, vector<16x128xf32>
    tpu.vector_store %arg3[%c8, %c0_51], %242 {strides = array<i32>} : memref<24x128xf32, #tpu.memory_space<vmem>>, vector<16x128xf32>,
    return
  }
}

</mosaic_0001>

<llo_original>
// kernel: relational_memory_forward.1
$region0: #{relational_memory_forward.1}
  #allocation0 [shape = 'u32[]', space=smem, size = 0x4, offset = 0x4, fixed_abs, tag = 'smem constant byte address 0x4 - core index']
  #allocation1 [shape = 'u32[144,128]{1,0:T(1,128)}', space=vmem, size = 0x12000, scoped, tag = 'internal scratch']
  %s0 = inlined_call_operand.vmem [shape: f32[16,16], index: 0, kind: input, shape index: {}]
  %s1 = inlined_call_operand.vmem [shape: f32[8,16], index: 1, kind: input, shape index: {}]
  %s2 = inlined_call_operand.hbm [shape: f32[120,128], index: 2, kind: input, shape index: {}]
  %s3 = inlined_call_operand.vmem [shape: f32[24,128], index: 3, kind: output, shape index: {}]
  %s4 = sld [smem:[#allocation0]]
  $region26: #{relational_memory_forward.1} parent=0
    _
  %s6 = ssub.s32 1, %s4
  %s7 = scalar_select 0, %s6, %s4
  $region1: #{relational_memory_forward.1} parent=0
    #allocation2 [shape = 'u8[61440]{0}', space=vmem, size = 0xf000, scoped, tag = 'input window, operand 2, single buffered']
    #allocation3 [shape = 's32[1]{0}', space=sflag, size = 0x4, scoped, tag = 'scoped memory for relational_memory_forward.1']
    %8 = vsyncpa [#allocation3], 0
    // Predicated region
    $region2: #{relational_memory_forward.1} parent=1 // pred_check
      _
    $region3: #{relational_memory_forward.1} parent=1 // pred_check_branch
      %10 = sbr.rel (0) target = $region5
    $region4: #{relational_memory_forward.1} parent=1 // pred_region
      _
    $region5: #{relational_memory_forward.1} parent=1 // pred_fallthru
      _
    // Predicated region
    $region6: #{relational_memory_forward.1} parent=1 // pred_check
      _
    $region7: #{relational_memory_forward.1} parent=1 // pred_check_branch
      %12 = sbr.rel (0) target = $region9
    $region8: #{relational_memory_forward.1} parent=1 // pred_region
      _
    $region9: #{relational_memory_forward.1} parent=1 // pred_fallthru
      _
    // Predicated region
    $region10: #{relational_memory_forward.1} parent=1 // pred_check
      _
    $region11: #{relational_memory_forward.1} parent=1 // pred_check_branch
      %14 = sbr.rel (0) target = $region13
    $region12: #{relational_memory_forward.1} parent=1 // pred_region
      %s16 = ssub.s32 1920, 1920
      %17 = vsyncadd [#allocation3], %s16
      %s18 = sshll.u32 [#allocation2], 4
      %s19 = int_to_ptr.vmem [resolvable:$true] %s18
      %24 = dma.hbm_to_vmem [thread:$0]  %s2, 1920, %s19, [#allocation3], 128, 128, 8
    $region13: #{relational_memory_forward.1} parent=1 // pred_fallthru
      _
    // Predicated region
    $region14: #{relational_memory_forward.1} parent=1 // pred_check
      _
    $region15: #{relational_memory_forward.1} parent=1 // pred_check_branch
      %26 = sbr.rel (0) target = $region17
    $region16: #{relational_memory_forward.1} parent=1 // pred_region
      %27 = dma.done [#allocation3], 1920
    $region17: #{relational_memory_forward.1} parent=1 // pred_fallthru
      _
    %v28 = vld [vmem:[#allocation2] sm:$0xff]
    %v29 = vld [vmem:[#allocation2 + $0x8] sm:$0xff]
    %v30 = vld [vmem:[#allocation2 + $0x10] sm:$0x1]
    %v31 = vld [vmem:[#allocation2 + $0x18] sm:$0x1]
    %v32 = vld [vmem:[#allocation2 + $0x20] sm:$0x1]
    %v33 = vld [vmem:[#allocation2 + $0x28] sm:$0xff]
    %v34 = vld [vmem:[#allocation2 + $0x30] sm:$0xff]
    %v35 = vld [vmem:[#allocation2 + $0x38] sm:$0xff]
    %v36 = vld [vmem:[#allocation2 + $0x40] sm:$0xff]
    %v37 = vld [vmem:[#allocation2 + $0x48] sm:$0xff]
    %v38 = vld [vmem:[#allocation2 + $0x50] sm:$0xff]
    %v39 = vld [vmem:[#allocation2 + $0x58] sm:$0xff]
    %v40 = vld [vmem:[#allocation2 + $0x60] sm:$0xff]
    %v41 = vld [vmem:[#allocation2 + $0x68] sm:$0xff]
    %v42 = vld [vmem:[#allocation2 + $0x70] sm:$0xff]
    %v43 = vld [vmem:[%s0] sm:$0xff]
    %v44 = vld [vmem:[%s0 + $0x8] sm:$0xff]
    %v45 = vld [vmem:[%s1] sm:$0xff]
    %v46 = vlaneseq
    %v47 = vshrl.u32 %v46, 7
    %v48 = vsub.s32 0, %v47
    %v49 = vrot.slane %v30, %v48
    %vm50 = vcmask 130048
    %v52 = vsel %vm50, %v43, 0
    %v55 = vsel %vm50, %v44, 0
    %v58 = vsel %vm50, %v45, 0
    %60 = vmatprep.subr.mxu0 0.0
    %61 = vmatpush1.msra.mxu0 %v28
    %62 = vmatprep.subr.mxu0 0.0
    %63 = vmatpush1.msra.mxu0 %v29
    %64 = vmatprep.subr.mxu0 0.0
    %65 = vmatpush1.msra.mxu0 0.0
    %66 = vmatprep.subr.mxu0 0.0
    %67 = vmatpush1.msra.mxu0 0.0
    %68 = vmatprep.subr.mxu0 0.0
    %69 = vmatpush1.msra.mxu0 0.0
    %70 = vmatprep.subr.mxu0 0.0
    %71 = vmatpush1.msra.mxu0 0.0
    %72 = vmatprep.subr.mxu0 0.0
    %73 = vmatpush1.msra.mxu0 0.0
    %74 = vmatprep.subr.mxu0 0.0
    %75 = vmatpush1.msra.mxu0 0.0
    %76 = vmatprep.subr.mxu0 0.0
    %77 = vmatpush1.msra.mxu0 0.0
    %78 = vmatprep.subr.mxu0 0.0
    %79 = vmatpush1.msra.mxu0 0.0
    %80 = vmatprep.subr.mxu0 0.0
    %81 = vmatpush1.msra.mxu0 0.0
    %82 = vmatprep.subr.mxu0 0.0
    %83 = vmatpush1.msra.mxu0 0.0
    %84 = vmatprep.subr.mxu0 0.0
    %85 = vmatpush1.msra.mxu0 0.0
    %86 = vmatprep.subr.mxu0 0.0
    %87 = vmatpush1.msra.mxu0 0.0
    %88 = vmatprep.subr.mxu0 0.0
    %89 = vmatpush1.msra.mxu0 0.0
    %90 = vmatprep.subr.mxu0 0.0
    %91 = vmatpush1.msra.mxu0 0.0
    %92 = vmatprep.subr.mxu0 0.0
    %93 = vmatpush1.msra.mxu0 0.0
    %94 = vmatprep.subr.mxu0 0.0
    %95 = vmatpush1.msra.mxu0 0.0
    %96 = vmatprep.subr.mxu0 0.0
    %97 = vmatpush1.msra.mxu0 0.0
    %98 = vmatprep.subr.mxu0 0.0
    %99 = vmatpush1.msra.mxu0 0.0
    %100 = vmatprep.subr.mxu0 0.0
    %101 = vmatpush1.msra.mxu0 0.0
    %102 = vmatprep.subr.mxu0 0.0
    %103 = vmatpush1.msra.mxu0 0.0
    %104 = vmatprep.subr.mxu0 0.0
    %105 = vmatpush1.msra.mxu0 0.0
    %106 = vmatprep.subr.mxu0 0.0
    %107 = vmatpush1.msra.mxu0 0.0
    %108 = vmatprep.subr.mxu0 0.0
    %109 = vmatpush1.msra.mxu0 0.0
    %110 = vmatprep.subr.mxu0 0.0
    %111 = vmatpush1.msra.mxu0 0.0
    %112 = vmatprep.subr.mxu0 0.0
    %113 = vmatpush1.msra.mxu0 0.0
    %114 = vmatprep.subr.mxu0 0.0
    %115 = vmatpush1.msra.mxu0 0.0
    %116 = vmatprep.subr.mxu0 0.0
    %117 = vmatpush1.msra.mxu0 0.0
    %118 = vmatprep.subr.mxu0 0.0
    %119 = vmatpush1.msra.mxu0 0.0
    %120 = vmatprep.subr.mxu0 0.0
    %121 = vmatpush1.msra.mxu0 0.0
    %122 = vmatprep.subr.mxu0 0.0
    %123 = vmatpush1.msra.mxu0 0.0
    %124 = vmatprep.mubr.f32.mxu0 0.0
    %125 = vmatmul.mubr.f32.gmra.mrb[0].mxu0 %v52
    %v126 = vpop.f32.mrb[0].mxu0
    %v127 = vadd.f32 %v49, %v126
    %v128 = vpop.f32.mrb[0].mxu0
    %129 = vmatprep.mubr.f32.mxu0 0.0
    %130 = vmatmul.mubr.f32.gmra.mrb[0].mxu0 %v55
    %v131 = vpop.f32.mrb[0].mxu0
    %v132 = vadd.f32 %v49, %v131
    %v133 = vpop.f32.mrb[0].mxu0
    %134 = vmatprep.mubr.f32.mxu0 0.0
    %135 = vmatmul.mubr.f32.gmra.mrb[0].mxu0 %v58
    %v136 = vpop.f32.mrb[0].mxu0
    %v137 = vadd.f32 %v49, %v136
    %v138 = vpop.f32.mrb[0].mxu0
    %139 = vdwg.mxu0
    %v141 = vcombine.high %v137, %v137
    %142 = vrot.lane.b32.xlu0 %v137, 64
    %v143 = vpop.permute.xlu0 %142
    %145 = vrot.lane.b32.xlu0 %v127, 96
    %v146 = vpop.permute.xlu0 %145
    %vm147 = vcmask 64512
    %v148 = vsel %vm147, %v143, 0
    %v150 = vsel %vm147, %v146, 0
    %152 = vmatprep.subr.mxu0 0.0
    %153 = vmatpush1.xpose.msra.mxu0 %v150
    %154 = vmatprep.subr.mxu0 0.0
    %155 = vmatpush1.xpose.msra.mxu0 0.0
    %156 = vmatprep.subr.mxu0 0.0
    %157 = vmatpush1.xpose.msra.mxu0 0.0
    %158 = vmatprep.subr.mxu0 0.0
    %159 = vmatpush1.xpose.msra.mxu0 0.0
    %160 = vmatprep.subr.mxu0 0.0
    %161 = vmatpush1.xpose.msra.mxu0 0.0
    %162 = vmatprep.subr.mxu0 0.0
    %163 = vmatpush1.xpose.msra.mxu0 0.0
    %164 = vmatprep.subr.mxu0 0.0
    %165 = vmatpush1.xpose.msra.mxu0 0.0
    %166 = vmatprep.subr.mxu0 0.0
    %167 = vmatpush1.xpose.msra.mxu0 0.0
    %168 = vmatprep.subr.mxu0 0.0
    %169 = vmatpush1.xpose.msra.mxu0 0.0
    %170 = vmatprep.subr.mxu0 0.0
    %171 = vmatpush1.xpose.msra.mxu0 0.0
    %172 = vmatprep.subr.mxu0 0.0
    %173 = vmatpush1.xpose.msra.mxu0 0.0
    %174 = vmatprep.subr.mxu0 0.0
    %175 = vmatpush1.xpose.msra.mxu0 0.0
    %176 = vmatprep.subr.mxu0 0.0
    %177 = vmatpush1.xpose.msra.mxu0 0.0
    %178 = vmatprep.subr.mxu0 0.0
    %179 = vmatpush1.xpose.msra.mxu0 0.0
    %180 = vmatprep.subr.mxu0 0.0
    %181 = vmatpush1.xpose.msra.mxu0 0.0
    %182 = vmatprep.subr.mxu0 0.0
    %183 = vmatpush1.xpose.msra.mxu0 0.0
    %184 = vmatprep.subr.mxu0 0.0
    %185 = vmatpush1.xpose.msra.mxu0 0.0
    %186 = vmatprep.subr.mxu0 0.0
    %187 = vmatpush1.xpose.msra.mxu0 0.0
    %188 = vmatprep.subr.mxu0 0.0
    %189 = vmatpush1.xpose.msra.mxu0 0.0
    %190 = vmatprep.subr.mxu0 0.0
    %191 = vmatpush1.xpose.msra.mxu0 0.0
    %192 = vmatprep.subr.mxu0 0.0
    %193 = vmatpush1.xpose.msra.mxu0 0.0
    %194 = vmatprep.subr.mxu0 0.0
    %195 = vmatpush1.xpose.msra.mxu0 0.0
    %196 = vmatprep.subr.mxu0 0.0
    %197 = vmatpush1.xpose.msra.mxu0 0.0
    %198 = vmatprep.subr.mxu0 0.0
    %199 = vmatpush1.xpose.msra.mxu0 0.0
    %200 = vmatprep.subr.mxu0 0.0
    %201 = vmatpush1.xpose.msra.mxu0 0.0
    %202 = vmatprep.subr.mxu0 0.0
    %203 = vmatpush1.xpose.msra.mxu0 0.0
    %204 = vmatprep.subr.mxu0 0.0
    %205 = vmatpush1.xpose.msra.mxu0 0.0
    %206 = vmatprep.subr.mxu0 0.0
    %207 = vmatpush1.xpose.msra.mxu0 0.0
    %208 = vmatprep.subr.mxu0 0.0
    %209 = vmatpush1.xpose.msra.mxu0 0.0
    %210 = vmatprep.subr.mxu0 0.0
    %211 = vmatpush1.xpose.msra.mxu0 0.0
    %212 = vmatprep.subr.mxu0 0.0
    %213 = vmatpush1.xpose.msra.mxu0 0.0
    %214 = vmatprep.subr.mxu0 0.0
    %215 = vmatpush1.xpose.msra.mxu0 0.0
    %216 = vmatprep.mubr.f32.mxu0 0.0
    %217 = vmatmul.mubr.f32.gmra.mrb[0].mxu0 %v148
    %v218 = vpop.f32.mrb[0].mxu0
    %v219 = vadd.f32 0.0, %v218
    %v220 = vpop.f32.mrb[0].mxu0
    %221 = vdwg.mxu0
    %222 = vrot.lane.b32.xlu0 %v141, 64
    %v223 = vpop.permute.xlu0 %222
    %225 = vrot.lane.b32.xlu0 %v132, 96
    %v226 = vpop.permute.xlu0 %225
    %v227 = vsel %vm147, %v223, 0
    %v229 = vsel %vm147, %v226, 0
    %231 = vmatprep.subr.mxu0 0.0
    %232 = vmatpush1.xpose.msra.mxu0 %v229
    %233 = vmatprep.subr.mxu0 0.0
    %234 = vmatpush1.xpose.msra.mxu0 0.0
    %235 = vmatprep.subr.mxu0 0.0
    %236 = vmatpush1.xpose.msra.mxu0 0.0
    %237 = vmatprep.subr.mxu0 0.0
    %238 = vmatpush1.xpose.msra.mxu0 0.0
    %239 = vmatprep.subr.mxu0 0.0
    %240 = vmatpush1.xpose.msra.mxu0 0.0
    %241 = vmatprep.subr.mxu0 0.0
    %242 = vmatpush1.xpose.msra.mxu0 0.0
    %243 = vmatprep.subr.mxu0 0.0
    %244 = vmatpush1.xpose.msra.mxu0 0.0
    %245 = vmatprep.subr.mxu0 0.0
    %246 = vmatpush1.xpose.msra.mxu0 0.0
    %247 = vmatprep.subr.mxu0 0.0
    %248 = vmatpush1.xpose.msra.mxu0 0.0
    %249 = vmatprep.subr.mxu0 0.0
    %250 = vmatpush1.xpose.msra.mxu0 0.0
    %251 = vmatprep.subr.mxu0 0.0
    %252 = vmatpush1.xpose.msra.mxu0 0.0
    %253 = vmatprep.subr.mxu0 0.0
    %254 = vmatpush1.xpose.msra.mxu0 0.0
    %255 = vmatprep.subr.mxu0 0.0
    %256 = vmatpush1.xpose.msra.mxu0 0.0
    %257 = vmatprep.subr.mxu0 0.0
    %258 = vmatpush1.xpose.msra.mxu0 0.0
    %259 = vmatprep.subr.mxu0 0.0
    %260 = vmatpush1.xpose.msra.mxu0 0.0
    %261 = vmatprep.subr.mxu0 0.0
    %262 = vmatpush1.xpose.msra.mxu0 0.0
    %263 = vmatprep.subr.mxu0 0.0
    %264 = vmatpush1.xpose.msra.mxu0 0.0
    %265 = vmatprep.subr.mxu0 0.0
    %266 = vmatpush1.xpose.msra.mxu0 0.0
    %267 = vmatprep.subr.mxu0 0.0
    %268 = vmatpush1.xpose.msra.mxu0 0.0
    %269 = vmatprep.subr.mxu0 0.0
    %270 = vmatpush1.xpose.msra.mxu0 0.0
    %271 = vmatprep.subr.mxu0 0.0
    %272 = vmatpush1.xpose.msra.mxu0 0.0
    %273 = vmatprep.subr.mxu0 0.0
    %274 = vmatpush1.xpose.msra.mxu0 0.0
    %275 = vmatprep.subr.mxu0 0.0
    %276 = vmatpush1.xpose.msra.mxu0 0.0
    %277 = vmatprep.subr.mxu0 0.0
    %278 = vmatpush1.xpose.msra.mxu0 0.0
    %279 = vmatprep.subr.mxu0 0.0
    %280 = vmatpush1.xpose.msra.mxu0 0.0
    %281 = vmatprep.subr.mxu0 0.0
    %282 = vmatpush1.xpose.msra.mxu0 0.0
    %283 = vmatprep.subr.mxu0 0.0
    %284 = vmatpush1.xpose.msra.mxu0 0.0
    %285 = vmatprep.subr.mxu0 0.0
    %286 = vmatpush1.xpose.msra.mxu0 0.0
    %287 = vmatprep.subr.mxu0 0.0
    %288 = vmatpush1.xpose.msra.mxu0 0.0
    %289 = vmatprep.subr.mxu0 0.0
    %290 = vmatpush1.xpose.msra.mxu0 0.0
    %291 = vmatprep.subr.mxu0 0.0
    %292 = vmatpush1.xpose.msra.mxu0 0.0
    %293 = vmatprep.subr.mxu0 0.0
    %294 = vmatpush1.xpose.msra.mxu0 0.0
    %295 = vmatprep.mubr.f32.mxu0 0.0
    %296 = vmatmul.mubr.f32.gmra.mrb[0].mxu0 %v227
    %v297 = vpop.f32.mrb[0].mxu0
    %v298 = vadd.f32 0.0, %v297
    %v299 = vpop.f32.mrb[0].mxu0
    %300 = vdwg.mxu0
    %vm301 = vcmask 60416
    %v302 = vsel %vm301, %v219, -inf
    %303 = vmax.xlane.f32.xlu0 %v302
    %v304 = vpop.xlane.xlu0 %303
    %v305 = vsel %vm301, %v298, -inf
    %306 = vmax.xlane.f32.xlu0 %v305
    %v307 = vpop.xlane.xlu0 %306
    %v308 = vsub.f32 %v219, %v304
    %v309 = vsub.f32 %v298, %v307
    %v310 = vmul.f32 %v308, 1.442695
    %v311 = vpow.pop %v310
    %v312 = vmul.f32 %v309, 1.442695
    %v313 = vpow.pop %v312
    %v314 = vsel %vm301, %v311, 0.0
    %315 = vadd.xlane.f32.xlu0 %v314
    %v316 = vpop.xlane.xlu0 %315
    %v317 = vsel %vm301, %v313, 0.0
    %318 = vadd.xlane.f32.xlu0 %v317
    %v319 = vpop.xlane.xlu0 %318
    %v320 = vrcp.pop %v316
    %v321 = vrcp.pop %v319
    %v322 = vmul.f32 %v311, %v320
    %v323 = vmul.f32 %v313, %v321
    %324 = vrot.lane.b32.xlu0 %v127, 80
    %v325 = vpop.permute.xlu0 %324
    %v328 = vsel %vm147, %v322, 0
    %330 = vmatprep.subr.mxu0 0.0
    %331 = vmatpush1.msra.mxu0 %v325
    %332 = vmatprep.subr.mxu0 0.0
    %333 = vmatpush1.msra.mxu0 0.0
    %334 = vmatprep.subr.mxu0 0.0
    %335 = vmatpush1.msra.mxu0 0.0
    %336 = vmatprep.subr.mxu0 0.0
    %337 = vmatpush1.msra.mxu0 0.0
    %338 = vmatprep.subr.mxu0 0.0
    %339 = vmatpush1.msra.mxu0 0.0
    %340 = vmatprep.subr.mxu0 0.0
    %341 = vmatpush1.msra.mxu0 0.0
    %342 = vmatprep.subr.mxu0 0.0
    %343 = vmatpush1.msra.mxu0 0.0
    %344 = vmatprep.subr.mxu0 0.0
    %345 = vmatpush1.msra.mxu0 0.0
    %346 = vmatprep.subr.mxu0 0.0
    %347 = vmatpush1.msra.mxu0 0.0
    %348 = vmatprep.subr.mxu0 0.0
    %349 = vmatpush1.msra.mxu0 0.0
    %350 = vmatprep.subr.mxu0 0.0
    %351 = vmatpush1.msra.mxu0 0.0
    %352 = vmatprep.subr.mxu0 0.0
    %353 = vmatpush1.msra.mxu0 0.0
    %354 = vmatprep.subr.mxu0 0.0
    %355 = vmatpush1.msra.mxu0 0.0
    %356 = vmatprep.subr.mxu0 0.0
    %357 = vmatpush1.msra.mxu0 0.0
    %358 = vmatprep.subr.mxu0 0.0
    %359 = vmatpush1.msra.mxu0 0.0
    %360 = vmatprep.subr.mxu0 0.0
    %361 = vmatpush1.msra.mxu0 0.0
    %362 = vmatprep.subr.mxu0 0.0
    %363 = vmatpush1.msra.mxu0 0.0
    %364 = vmatprep.subr.mxu0 0.0
    %365 = vmatpush1.msra.mxu0 0.0
    %366 = vmatprep.subr.mxu0 0.0
    %367 = vmatpush1.msra.mxu0 0.0
    %368 = vmatprep.subr.mxu0 0.0
    %369 = vmatpush1.msra.mxu0 0.0
    %370 = vmatprep.subr.mxu0 0.0
    %371 = vmatpush1.msra.mxu0 0.0
    %372 = vmatprep.subr.mxu0 0.0
    %373 = vmatpush1.msra.mxu0 0.0
    %374 = vmatprep.subr.mxu0 0.0
    %375 = vmatpush1.msra.mxu0 0.0
    %376 = vmatprep.subr.mxu0 0.0
    %377 = vmatpush1.msra.mxu0 0.0
    %378 = vmatprep.subr.mxu0 0.0
    %379 = vmatpush1.msra.mxu0 0.0
    %380 = vmatprep.subr.mxu0 0.0
    %381 = vmatpush1.msra.mxu0 0.0
    %382 = vmatprep.subr.mxu0 0.0
    %383 = vmatpush1.msra.mxu0 0.0
    %384 = vmatprep.subr.mxu0 0.0
    %385 = vmatpush1.msra.mxu0 0.0
    %386 = vmatprep.subr.mxu0 0.0
    %387 = vmatpush1.msra.mxu0 0.0
    %388 = vmatprep.subr.mxu0 0.0
    %389 = vmatpush1.msra.mxu0 0.0
    %390 = vmatprep.subr.mxu0 0.0
    %391 = vmatpush1.msra.mxu0 0.0
    %392 = vmatprep.subr.mxu0 0.0
    %393 = vmatpush1.msra.mxu0 0.0
    %394 = vmatprep.mubr.f32.mxu0 0.0
    %395 = vmatmul.mubr.f32.gmra.mrb[0].mxu0 %v328
    %v396 = vpop.f32.mrb[0].mxu0
    %v397 = vadd.f32 0.0, %v396
    %v398 = vpop.f32.mrb[0].mxu0
    %399 = vdwg.mxu0
    %400 = vrot.lane.b32.xlu0 %v132, 80
    %v401 = vpop.permute.xlu0 %400
    %v404 = vsel %vm147, %v323, 0
    %406 = vmatprep.subr.mxu0 0.0
    %407 = vmatpush1.msra.mxu0 %v401
    %408 = vmatprep.subr.mxu0 0.0
    %409 = vmatpush1.msra.mxu0 0.0
    %410 = vmatprep.subr.mxu0 0.0
    %411 = vmatpush1.msra.mxu0 0.0
    %412 = vmatprep.subr.mxu0 0.0
    %413 = vmatpush1.msra.mxu0 0.0
    %414 = vmatprep.subr.mxu0 0.0
    %415 = vmatpush1.msra.mxu0 0.0
    %416 = vmatprep.subr.mxu0 0.0
    %417 = vmatpush1.msra.mxu0 0.0
    %418 = vmatprep.subr.mxu0 0.0
    %419 = vmatpush1.msra.mxu0 0.0
    %420 = vmatprep.subr.mxu0 0.0
    %421 = vmatpush1.msra.mxu0 0.0
    %422 = vmatprep.subr.mxu0 0.0
    %423 = vmatpush1.msra.mxu0 0.0
    %424 = vmatprep.subr.mxu0 0.0
    %425 = vmatpush1.msra.mxu0 0.0
    %426 = vmatprep.subr.mxu0 0.0
    %427 = vmatpush1.msra.mxu0 0.0
    %428 = vmatprep.subr.mxu0 0.0
    %429 = vmatpush1.msra.mxu0 0.0
    %430 = vmatprep.subr.mxu0 0.0
    %431 = vmatpush1.msra.mxu0 0.0
    %432 = vmatprep.subr.mxu0 0.0
    %433 = vmatpush1.msra.mxu0 0.0
    %434 = vmatprep.subr.mxu0 0.0
    %435 = vmatpush1.msra.mxu0 0.0
    %436 = vmatprep.subr.mxu0 0.0
    %437 = vmatpush1.msra.mxu0 0.0
    %438 = vmatprep.subr.mxu0 0.0
    %439 = vmatpush1.msra.mxu0 0.0
    %440 = vmatprep.subr.mxu0 0.0
    %441 = vmatpush1.msra.mxu0 0.0
    %442 = vmatprep.subr.mxu0 0.0
    %443 = vmatpush1.msra.mxu0 0.0
    %444 = vmatprep.subr.mxu0 0.0
    %445 = vmatpush1.msra.mxu0 0.0
    %446 = vmatprep.subr.mxu0 0.0
    %447 = vmatpush1.msra.mxu0 0.0
    %448 = vmatprep.subr.mxu0 0.0
    %449 = vmatpush1.msra.mxu0 0.0
    %450 = vmatprep.subr.mxu0 0.0
    %451 = vmatpush1.msra.mxu0 0.0
    %452 = vmatprep.subr.mxu0 0.0
    %453 = vmatpush1.msra.mxu0 0.0
    %454 = vmatprep.subr.mxu0 0.0
    %455 = vmatpush1.msra.mxu0 0.0
    %456 = vmatprep.subr.mxu0 0.0
    %457 = vmatpush1.msra.mxu0 0.0
    %458 = vmatprep.subr.mxu0 0.0
    %459 = vmatpush1.msra.mxu0 0.0
    %460 = vmatprep.subr.mxu0 0.0
    %461 = vmatpush1.msra.mxu0 0.0
    %462 = vmatprep.subr.mxu0 0.0
    %463 = vmatpush1.msra.mxu0 0.0
    %464 = vmatprep.subr.mxu0 0.0
    %465 = vmatpush1.msra.mxu0 0.0
    %466 = vmatprep.subr.mxu0 0.0
    %467 = vmatpush1.msra.mxu0 0.0
    %468 = vmatprep.subr.mxu0 0.0
    %469 = vmatpush1.msra.mxu0 0.0
    %470 = vmatprep.mubr.f32.mxu0 0.0
    %471 = vmatmul.mubr.f32.gmra.mrb[0].mxu0 %v404
    %v472 = vpop.f32.mrb[0].mxu0
    %v473 = vadd.f32 0.0, %v472
    %v474 = vpop.f32.mrb[0].mxu0
    %475 = vdwg.mxu0
    %476 = vrot.lane.b32.xlu0 %v137, 56
    %v477 = vpop.permute.xlu0 %476
    %478 = vrot.lane.b32.xlu0 %v127, 88
    %v479 = vpop.permute.xlu0 %478
    %v480 = vsel %vm147, %v477, 0
    %v482 = vsel %vm147, %v479, 0
    %484 = vmatprep.subr.mxu0 0.0
    %485 = vmatpush1.xpose.msra.mxu0 %v482
    %486 = vmatprep.subr.mxu0 0.0
    %487 = vmatpush1.xpose.msra.mxu0 0.0
    %488 = vmatprep.subr.mxu0 0.0
    %489 = vmatpush1.xpose.msra.mxu0 0.0
    %490 = vmatprep.subr.mxu0 0.0
    %491 = vmatpush1.xpose.msra.mxu0 0.0
    %492 = vmatprep.subr.mxu0 0.0
    %493 = vmatpush1.xpose.msra.mxu0 0.0
    %494 = vmatprep.subr.mxu0 0.0
    %495 = vmatpush1.xpose.msra.mxu0 0.0
    %496 = vmatprep.subr.mxu0 0.0
    %497 = vmatpush1.xpose.msra.mxu0 0.0
    %498 = vmatprep.subr.mxu0 0.0
    %499 = vmatpush1.xpose.msra.mxu0 0.0
    %500 = vmatprep.subr.mxu0 0.0
    %501 = vmatpush1.xpose.msra.mxu0 0.0
    %502 = vmatprep.subr.mxu0 0.0
    %503 = vmatpush1.xpose.msra.mxu0 0.0
    %504 = vmatprep.subr.mxu0 0.0
    %505 = vmatpush1.xpose.msra.mxu0 0.0
    %506 = vmatprep.subr.mxu0 0.0
    %507 = vmatpush1.xpose.msra.mxu0 0.0
    %508 = vmatprep.subr.mxu0 0.0
    %509 = vmatpush1.xpose.msra.mxu0 0.0
    %510 = vmatprep.subr.mxu0 0.0
    %511 = vmatpush1.xpose.msra.mxu0 0.0
    %512 = vmatprep.subr.mxu0 0.0
    %513 = vmatpush1.xpose.msra.mxu0 0.0
    %514 = vmatprep.subr.mxu0 0.0
    %515 = vmatpush1.xpose.msra.mxu0 0.0
    %516 = vmatprep.subr.mxu0 0.0
    %517 = vmatpush1.xpose.msra.mxu0 0.0
    %518 = vmatprep.subr.mxu0 0.0
    %519 = vmatpush1.xpose.msra.mxu0 0.0
    %520 = vmatprep.subr.mxu0 0.0
    %521 = vmatpush1.xpose.msra.mxu0 0.0
    %522 = vmatprep.subr.mxu0 0.0
    %523 = vmatpush1.xpose.msra.mxu0 0.0
    %524 = vmatprep.subr.mxu0 0.0
    %525 = vmatpush1.xpose.msra.mxu0 0.0
    %526 = vmatprep.subr.mxu0 0.0
    %527 = vmatpush1.xpose.msra.mxu0 0.0
    %528 = vmatprep.subr.mxu0 0.0
    %529 = vmatpush1.xpose.msra.mxu0 0.0
    %530 = vmatprep.subr.mxu0 0.0
    %531 = vmatpush1.xpose.msra.mxu0 0.0
    %532 = vmatprep.subr.mxu0 0.0
    %533 = vmatpush1.xpose.msra.mxu0 0.0
    %534 = vmatprep.subr.mxu0 0.0
    %535 = vmatpush1.xpose.msra.mxu0 0.0
    %536 = vmatprep.subr.mxu0 0.0
    %537 = vmatpush1.xpose.msra.mxu0 0.0
    %538 = vmatprep.subr.mxu0 0.0
    %539 = vmatpush1.xpose.msra.mxu0 0.0
    %540 = vmatprep.subr.mxu0 0.0
    %541 = vmatpush1.xpose.msra.mxu0 0.0
    %542 = vmatprep.subr.mxu0 0.0
    %543 = vmatpush1.xpose.msra.mxu0 0.0
    %544 = vmatprep.subr.mxu0 0.0
    %545 = vmatpush1.xpose.msra.mxu0 0.0
    %546 = vmatprep.subr.mxu0 0.0
    %547 = vmatpush1.xpose.msra.mxu0 0.0
    %548 = vmatprep.mubr.f32.mxu0 0.0
    %549 = vmatmul.mubr.f32.gmra.mrb[0].mxu0 %v480
    %v550 = vpop.f32.mrb[0].mxu0
    %v551 = vadd.f32 0.0, %v550
    %v552 = vpop.f32.mrb[0].mxu0
    %553 = vdwg.mxu0
    %554 = vrot.lane.b32.xlu0 %v141, 56
    %v555 = vpop.permute.xlu0 %554
    %556 = vrot.lane.b32.xlu0 %v132, 88
    %v557 = vpop.permute.xlu0 %556
    %v558 = vsel %vm147, %v555, 0
    %v560 = vsel %vm147, %v557, 0
    %562 = vmatprep.subr.mxu0 0.0
    %563 = vmatpush1.xpose.msra.mxu0 %v560
    %564 = vmatprep.subr.mxu0 0.0
    %565 = vmatpush1.xpose.msra.mxu0 0.0
    %566 = vmatprep.subr.mxu0 0.0
    %567 = vmatpush1.xpose.msra.mxu0 0.0
    %568 = vmatprep.subr.mxu0 0.0
    %569 = vmatpush1.xpose.msra.mxu0 0.0
    %570 = vmatprep.subr.mxu0 0.0
    %571 = vmatpush1.xpose.msra.mxu0 0.0
    %572 = vmatprep.subr.mxu0 0.0
    %573 = vmatpush1.xpose.msra.mxu0 0.0
    %574 = vmatprep.subr.mxu0 0.0
    %575 = vmatpush1.xpose.msra.mxu0 0.0
    %576 = vmatprep.subr.mxu0 0.0
    %577 = vmatpush1.xpose.msra.mxu0 0.0
    %578 = vmatprep.subr.mxu0 0.0
    %579 = vmatpush1.xpose.msra.mxu0 0.0
    %580 = vmatprep.subr.mxu0 0.0
    %581 = vmatpush1.xpose.msra.mxu0 0.0
    %582 = vmatprep.subr.mxu0 0.0
    %583 = vmatpush1.xpose.msra.mxu0 0.0
    %584 = vmatprep.subr.mxu0 0.0
    %585 = vmatpush1.xpose.msra.mxu0 0.0
    %586 = vmatprep.subr.mxu0 0.0
    %587 = vmatpush1.xpose.msra.mxu0 0.0
    %588 = vmatprep.subr.mxu0 0.0
    %589 = vmatpush1.xpose.msra.mxu0 0.0
    %590 = vmatprep.subr.mxu0 0.0
    %591 = vmatpush1.xpose.msra.mxu0 0.0
    %592 = vmatprep.subr.mxu0 0.0
    %593 = vmatpush1.xpose.msra.mxu0 0.0
    %594 = vmatprep.subr.mxu0 0.0
    %595 = vmatpush1.xpose.msra.mxu0 0.0
    %596 = vmatprep.subr.mxu0 0.0
    %597 = vmatpush1.xpose.msra.mxu0 0.0
    %598 = vmatprep.subr.mxu0 0.0
    %599 = vmatpush1.xpose.msra.mxu0 0.0
    %600 = vmatprep.subr.mxu0 0.0
    %601 = vmatpush1.xpose.msra.mxu0 0.0
    %602 = vmatprep.subr.mxu0 0.0
    %603 = vmatpush1.xpose.msra.mxu0 0.0
    %604 = vmatprep.subr.mxu0 0.0
    %605 = vmatpush1.xpose.msra.mxu0 0.0
    %606 = vmatprep.subr.mxu0 0.0
    %607 = vmatpush1.xpose.msra.mxu0 0.0
    %608 = vmatprep.subr.mxu0 0.0
    %609 = vmatpush1.xpose.msra.mxu0 0.0
    %610 = vmatprep.subr.mxu0 0.0
    %611 = vmatpush1.xpose.msra.mxu0 0.0
    %612 = vmatprep.subr.mxu0 0.0
    %613 = vmatpush1.xpose.msra.mxu0 0.0
    %614 = vmatprep.subr.mxu0 0.0
    %615 = vmatpush1.xpose.msra.mxu0 0.0
    %616 = vmatprep.subr.mxu0 0.0
    %617 = vmatpush1.xpose.msra.mxu0 0.0
    %618 = vmatprep.subr.mxu0 0.0
    %619 = vmatpush1.xpose.msra.mxu0 0.0
    %620 = vmatprep.subr.mxu0 0.0
    %621 = vmatpush1.xpose.msra.mxu0 0.0
    %622 = vmatprep.subr.mxu0 0.0
    %623 = vmatpush1.xpose.msra.mxu0 0.0
    %624 = vmatprep.subr.mxu0 0.0
    %625 = vmatpush1.xpose.msra.mxu0 0.0
    %626 = vmatprep.mubr.f32.mxu0 0.0
    %627 = vmatmul.mubr.f32.gmra.mrb[0].mxu0 %v558
    %v628 = vpop.f32.mrb[0].mxu0
    %v629 = vadd.f32 0.0, %v628
    %v630 = vpop.f32.mrb[0].mxu0
    %631 = vdwg.mxu0
    %v632 = vsel %vm301, %v551, -inf
    %633 = vmax.xlane.f32.xlu0 %v632
    %v634 = vpop.xlane.xlu0 %633
    %v635 = vsel %vm301, %v629, -inf
    %636 = vmax.xlane.f32.xlu0 %v635
    %v637 = vpop.xlane.xlu0 %636
    %v638 = vsub.f32 %v551, %v634
    %v639 = vsub.f32 %v629, %v637
    %v640 = vmul.f32 %v638, 1.442695
    %v641 = vpow.pop %v640
    %v642 = vmul.f32 %v639, 1.442695
    %v643 = vpow.pop %v642
    %v644 = vsel %vm301, %v641, 0.0
    %645 = vadd.xlane.f32.xlu0 %v644
    %v646 = vpop.xlane.xlu0 %645
    %v647 = vsel %vm301, %v643, 0.0
    %648 = vadd.xlane.f32.xlu0 %v647
    %v649 = vpop.xlane.xlu0 %648
    %v650 = vrcp.pop %v646
    %v651 = vrcp.pop %v649
    %v652 = vmul.f32 %v641, %v650
    %v653 = vmul.f32 %v643, %v651
    %v654 = vadd.f32 %v322, %v652
    %v655 = vadd.f32 %v323, %v653
    %656 = vrot.lane.b32.xlu0 %v127, 72
    %v657 = vpop.permute.xlu0 %656
    %v660 = vsel %vm147, %v652, 0
    %662 = vmatprep.subr.mxu0 0.0
    %663 = vmatpush1.msra.mxu0 %v657
    %664 = vmatprep.subr.mxu0 0.0
    %665 = vmatpush1.msra.mxu0 0.0
    %666 = vmatprep.subr.mxu0 0.0
    %667 = vmatpush1.msra.mxu0 0.0
    %668 = vmatprep.subr.mxu0 0.0
    %669 = vmatpush1.msra.mxu0 0.0
    %670 = vmatprep.subr.mxu0 0.0
    %671 = vmatpush1.msra.mxu0 0.0
    %672 = vmatprep.subr.mxu0 0.0
    %673 = vmatpush1.msra.mxu0 0.0
    %674 = vmatprep.subr.mxu0 0.0
    %675 = vmatpush1.msra.mxu0 0.0
    %676 = vmatprep.subr.mxu0 0.0
    %677 = vmatpush1.msra.mxu0 0.0
    %678 = vmatprep.subr.mxu0 0.0
    %679 = vmatpush1.msra.mxu0 0.0
    %680 = vmatprep.subr.mxu0 0.0
    %681 = vmatpush1.msra.mxu0 0.0
    %682 = vmatprep.subr.mxu0 0.0
    %683 = vmatpush1.msra.mxu0 0.0
    %684 = vmatprep.subr.mxu0 0.0
    %685 = vmatpush1.msra.mxu0 0.0
    %686 = vmatprep.subr.mxu0 0.0
    %687 = vmatpush1.msra.mxu0 0.0
    %688 = vmatprep.subr.mxu0 0.0
    %689 = vmatpush1.msra.mxu0 0.0
    %690 = vmatprep.subr.mxu0 0.0
    %691 = vmatpush1.msra.mxu0 0.0
    %692 = vmatprep.subr.mxu0 0.0
    %693 = vmatpush1.msra.mxu0 0.0
    %694 = vmatprep.subr.mxu0 0.0
    %695 = vmatpush1.msra.mxu0 0.0
    %696 = vmatprep.subr.mxu0 0.0
    %697 = vmatpush1.msra.mxu0 0.0
    %698 = vmatprep.subr.mxu0 0.0
    %699 = vmatpush1.msra.mxu0 0.0
    %700 = vmatprep.subr.mxu0 0.0
    %701 = vmatpush1.msra.mxu0 0.0
    %702 = vmatprep.subr.mxu0 0.0
    %703 = vmatpush1.msra.mxu0 0.0
    %704 = vmatprep.subr.mxu0 0.0
    %705 = vmatpush1.msra.mxu0 0.0
    %706 = vmatprep.subr.mxu0 0.0
    %707 = vmatpush1.msra.mxu0 0.0
    %708 = vmatprep.subr.mxu0 0.0
    %709 = vmatpush1.msra.mxu0 0.0
    %710 = vmatprep.subr.mxu0 0.0
    %711 = vmatpush1.msra.mxu0 0.0
    %712 = vmatprep.subr.mxu0 0.0
    %713 = vmatpush1.msra.mxu0 0.0
    %714 = vmatprep.subr.mxu0 0.0
    %715 = vmatpush1.msra.mxu0 0.0
    %716 = vmatprep.subr.mxu0 0.0
    %717 = vmatpush1.msra.mxu0 0.0
    %718 = vmatprep.subr.mxu0 0.0
    %719 = vmatpush1.msra.mxu0 0.0
    %720 = vmatprep.subr.mxu0 0.0
    %721 = vmatpush1.msra.mxu0 0.0
    %722 = vmatprep.subr.mxu0 0.0
    %723 = vmatpush1.msra.mxu0 0.0
    %724 = vmatprep.subr.mxu0 0.0
    %725 = vmatpush1.msra.mxu0 0.0
    %726 = vmatprep.mubr.f32.mxu0 0.0
    %727 = vmatmul.mubr.f32.gmra.mrb[0].mxu0 %v660
    %v728 = vpop.f32.mrb[0].mxu0
    %v729 = vadd.f32 0.0, %v728
    %v730 = vpop.f32.mrb[0].mxu0
    %731 = vdwg.mxu0
    %732 = vrot.lane.b32.xlu0 %v132, 72
    %v733 = vpop.permute.xlu0 %732
    %v736 = vsel %vm147, %v653, 0
    %738 = vmatprep.subr.mxu0 0.0
    %739 = vmatpush1.msra.mxu0 %v733
    %740 = vmatprep.subr.mxu0 0.0
    %741 = vmatpush1.msra.mxu0 0.0
    %742 = vmatprep.subr.mxu0 0.0
    %743 = vmatpush1.msra.mxu0 0.0
    %744 = vmatprep.subr.mxu0 0.0
    %745 = vmatpush1.msra.mxu0 0.0
    %746 = vmatprep.subr.mxu0 0.0
    %747 = vmatpush1.msra.mxu0 0.0
    %748 = vmatprep.subr.mxu0 0.0
    %749 = vmatpush1.msra.mxu0 0.0
    %750 = vmatprep.subr.mxu0 0.0
    %751 = vmatpush1.msra.mxu0 0.0
    %752 = vmatprep.subr.mxu0 0.0
    %753 = vmatpush1.msra.mxu0 0.0
    %754 = vmatprep.subr.mxu0 0.0
    %755 = vmatpush1.msra.mxu0 0.0
    %756 = vmatprep.subr.mxu0 0.0
    %757 = vmatpush1.msra.mxu0 0.0
    %758 = vmatprep.subr.mxu0 0.0
    %759 = vmatpush1.msra.mxu0 0.0
    %760 = vmatprep.subr.mxu0 0.0
    %761 = vmatpush1.msra.mxu0 0.0
    %762 = vmatprep.subr.mxu0 0.0
    %763 = vmatpush1.msra.mxu0 0.0
    %764 = vmatprep.subr.mxu0 0.0
    %765 = vmatpush1.msra.mxu0 0.0
    %766 = vmatprep.subr.mxu0 0.0
    %767 = vmatpush1.msra.mxu0 0.0
    %768 = vmatprep.subr.mxu0 0.0
    %769 = vmatpush1.msra.mxu0 0.0
    %770 = vmatprep.subr.mxu0 0.0
    %771 = vmatpush1.msra.mxu0 0.0
    %772 = vmatprep.subr.mxu0 0.0
    %773 = vmatpush1.msra.mxu0 0.0
    %774 = vmatprep.subr.mxu0 0.0
    %775 = vmatpush1.msra.mxu0 0.0
    %776 = vmatprep.subr.mxu0 0.0
    %777 = vmatpush1.msra.mxu0 0.0
    %778 = vmatprep.subr.mxu0 0.0
    %779 = vmatpush1.msra.mxu0 0.0
    %780 = vmatprep.subr.mxu0 0.0
    %781 = vmatpush1.msra.mxu0 0.0
    %782 = vmatprep.subr.mxu0 0.0
    %783 = vmatpush1.msra.mxu0 0.0
    %784 = vmatprep.subr.mxu0 0.0
    %785 = vmatpush1.msra.mxu0 0.0
    %786 = vmatprep.subr.mxu0 0.0
    %787 = vmatpush1.msra.mxu0 0.0
    %788 = vmatprep.subr.mxu0 0.0
    %789 = vmatpush1.msra.mxu0 0.0
    %790 = vmatprep.subr.mxu0 0.0
    %791 = vmatpush1.msra.mxu0 0.0
    %792 = vmatprep.subr.mxu0 0.0
    %793 = vmatpush1.msra.mxu0 0.0
    %794 = vmatprep.subr.mxu0 0.0
    %795 = vmatpush1.msra.mxu0 0.0
    %796 = vmatprep.subr.mxu0 0.0
    %797 = vmatpush1.msra.mxu0 0.0
    %798 = vmatprep.subr.mxu0 0.0
    %799 = vmatpush1.msra.mxu0 0.0
    %800 = vmatprep.subr.mxu0 0.0
    %801 = vmatpush1.msra.mxu0 0.0
    %802 = vmatprep.mubr.f32.mxu0 0.0
    %803 = vmatmul.mubr.f32.gmra.mrb[0].mxu0 %v736
    %v804 = vpop.f32.mrb[0].mxu0
    %v805 = vadd.f32 0.0, %v804
    %v806 = vpop.f32.mrb[0].mxu0
    %807 = vdwg.mxu0
    %810 = vrot.lane.b32.xlu0 %v729, 8
    %v811 = vpop.permute.xlu0 %810
    %812 = vrot.lane.b32.xlu0 %v805, 8
    %v813 = vpop.permute.xlu0 %812
    %v816 = vsel %vm147, %v397, %v811
    %v817 = vsel %vm147, %v473, %v813
    %v818 = vmul.f32 %v654, 0.5
    %v819 = vmul.f32 %v655, 0.5
    %v822 = vcombine.low %v816, %v817
    %v824 = vadd.f32 %v45, %v822
    %v825 = vsel %vm50, %v824, 0.0
    %826 = vadd.xlane.f32.xlu0 %v825
    %v827 = vpop.xlane.xlu0 %826
    %v828 = vmul.f32 %v824, %v824
    %v829 = vsel %vm50, %v828, 0.0
    %830 = vadd.xlane.f32.xlu0 %v829
    %v831 = vpop.xlane.xlu0 %830
    %v832 = vmul.f32 %v827, 0.0625
    %v833 = vmul.f32 %v831, 0.0625
    %v834 = vmul.f32 %v832, %v832
    %v835 = vsub.f32 %v833, %v834
    %v836 = vsub.f32 %v824, %v832
    %v837 = vadd.f32 %v835, 1e-05
    %v838 = vrsqrt.pop %v837
    %v839 = vmul.f32 %v836, %v838
    %v840 = vlaneseq
    %v841 = vshrl.u32 %v840, 7
    %v842 = vsub.s32 0, %v841
    %v843 = vrot.slane %v32, %v842
    %v844 = vmul.f32 %v839, %v843
    %846 = vrot.lane.b32.xlu0 %v843, 112
    %v847 = vpop.permute.xlu0 %846
    %v849 = vadd.f32 %v844, %v847
    %852 = vrot.lane.b32.xlu0 %v28, 48
    %v853 = vpop.permute.xlu0 %852
    %854 = vrot.lane.b32.xlu0 %v29, 48
    %v855 = vpop.permute.xlu0 %854
    %859 = vrot.lane.b32.xlu0 %v49, 48
    %v860 = vpop.permute.xlu0 %859
    %v863 = vsel %vm50, %v849, 0
    %865 = vmatprep.subr.mxu0 0.0
    %866 = vmatpush1.msra.mxu0 %v853
    %867 = vmatprep.subr.mxu0 0.0
    %868 = vmatpush1.msra.mxu0 %v855
    %869 = vmatprep.subr.mxu0 0.0
    %870 = vmatpush1.msra.mxu0 0.0
    %871 = vmatprep.subr.mxu0 0.0
    %872 = vmatpush1.msra.mxu0 0.0
    %873 = vmatprep.subr.mxu0 0.0
    %874 = vmatpush1.msra.mxu0 0.0
    %875 = vmatprep.subr.mxu0 0.0
    %876 = vmatpush1.msra.mxu0 0.0
    %877 = vmatprep.subr.mxu0 0.0
    %878 = vmatpush1.msra.mxu0 0.0
    %879 = vmatprep.subr.mxu0 0.0
    %880 = vmatpush1.msra.mxu0 0.0
    %881 = vmatprep.subr.mxu0 0.0
    %882 = vmatpush1.msra.mxu0 0.0
    %883 = vmatprep.subr.mxu0 0.0
    %884 = vmatpush1.msra.mxu0 0.0
    %885 = vmatprep.subr.mxu0 0.0
    %886 = vmatpush1.msra.mxu0 0.0
    %887 = vmatprep.subr.mxu0 0.0
    %888 = vmatpush1.msra.mxu0 0.0
    %889 = vmatprep.subr.mxu0 0.0
    %890 = vmatpush1.msra.mxu0 0.0
    %891 = vmatprep.subr.mxu0 0.0
    %892 = vmatpush1.msra.mxu0 0.0
    %893 = vmatprep.subr.mxu0 0.0
    %894 = vmatpush1.msra.mxu0 0.0
    %895 = vmatprep.subr.mxu0 0.0
    %896 = vmatpush1.msra.mxu0 0.0
    %897 = vmatprep.subr.mxu0 0.0
    %898 = vmatpush1.msra.mxu0 0.0
    %899 = vmatprep.subr.mxu0 0.0
    %900 = vmatpush1.msra.mxu0 0.0
    %901 = vmatprep.subr.mxu0 0.0
    %902 = vmatpush1.msra.mxu0 0.0
    %903 = vmatprep.subr.mxu0 0.0
    %904 = vmatpush1.msra.mxu0 0.0
    %905 = vmatprep.subr.mxu0 0.0
    %906 = vmatpush1.msra.mxu0 0.0
    %907 = vmatprep.subr.mxu0 0.0
    %908 = vmatpush1.msra.mxu0 0.0
    %909 = vmatprep.subr.mxu0 0.0
    %910 = vmatpush1.msra.mxu0 0.0
    %911 = vmatprep.subr.mxu0 0.0
    %912 = vmatpush1.msra.mxu0 0.0
    %913 = vmatprep.subr.mxu0 0.0
    %914 = vmatpush1.msra.mxu0 0.0
    %915 = vmatprep.subr.mxu0 0.0
    %916 = vmatpush1.msra.mxu0 0.0
    %917 = vmatprep.subr.mxu0 0.0
    %918 = vmatpush1.msra.mxu0 0.0
    %919 = vmatprep.subr.mxu0 0.0
    %920 = vmatpush1.msra.mxu0 0.0
    %921 = vmatprep.subr.mxu0 0.0
    %922 = vmatpush1.msra.mxu0 0.0
    %923 = vmatprep.subr.mxu0 0.0
    %924 = vmatpush1.msra.mxu0 0.0
    %925 = vmatprep.subr.mxu0 0.0
    %926 = vmatpush1.msra.mxu0 0.0
    %927 = vmatprep.subr.mxu0 0.0
    %928 = vmatpush1.msra.mxu0 0.0
    %929 = vmatprep.mubr.f32.mxu0 0.0
    %930 = vmatmul.mubr.f32.gmra.mrb[0].mxu0 %v863
    %v931 = vpop.f32.mrb[0].mxu0
    %v932 = vadd.f32 %v860, %v931
    %v933 = vpop.f32.mrb[0].mxu0
    %934 = vdwg.mxu0
    %v935 = vmax.f32 %v932, 0.0
    %v937 = vsel %vm50, %v935, 0
    %939 = vmatprep.subr.mxu0 0.0
    %940 = vmatpush1.msra.mxu0 %v853
    %941 = vmatprep.subr.mxu0 0.0
    %942 = vmatpush1.msra.mxu0 %v855
    %943 = vmatprep.subr.mxu0 0.0
    %944 = vmatpush1.msra.mxu0 0.0
    %945 = vmatprep.subr.mxu0 0.0
    %946 = vmatpush1.msra.mxu0 0.0
    %947 = vmatprep.subr.mxu0 0.0
    %948 = vmatpush1.msra.mxu0 0.0
    %949 = vmatprep.subr.mxu0 0.0
    %950 = vmatpush1.msra.mxu0 0.0
    %951 = vmatprep.subr.mxu0 0.0
    %952 = vmatpush1.msra.mxu0 0.0
    %953 = vmatprep.subr.mxu0 0.0
    %954 = vmatpush1.msra.mxu0 0.0
    %955 = vmatprep.subr.mxu0 0.0
    %956 = vmatpush1.msra.mxu0 0.0
    %957 = vmatprep.subr.mxu0 0.0
    %958 = vmatpush1.msra.mxu0 0.0
    %959 = vmatprep.subr.mxu0 0.0
    %960 = vmatpush1.msra.mxu0 0.0
    %961 = vmatprep.subr.mxu0 0.0
    %962 = vmatpush1.msra.mxu0 0.0
    %963 = vmatprep.subr.mxu0 0.0
    %964 = vmatpush1.msra.mxu0 0.0
    %965 = vmatprep.subr.mxu0 0.0
    %966 = vmatpush1.msra.mxu0 0.0
    %967 = vmatprep.subr.mxu0 0.0
    %968 = vmatpush1.msra.mxu0 0.0
    %969 = vmatprep.subr.mxu0 0.0
    %970 = vmatpush1.msra.mxu0 0.0
    %971 = vmatprep.subr.mxu0 0.0
    %972 = vmatpush1.msra.mxu0 0.0
    %973 = vmatprep.subr.mxu0 0.0
    %974 = vmatpush1.msra.mxu0 0.0
    %975 = vmatprep.subr.mxu0 0.0
    %976 = vmatpush1.msra.mxu0 0.0
    %977 = vmatprep.subr.mxu0 0.0
    %978 = vmatpush1.msra.mxu0 0.0
    %979 = vmatprep.subr.mxu0 0.0
    %980 = vmatpush1.msra.mxu0 0.0
    %981 = vmatprep.subr.mxu0 0.0
    %982 = vmatpush1.msra.mxu0 0.0
    %983 = vmatprep.subr.mxu0 0.0
    %984 = vmatpush1.msra.mxu0 0.0
    %985 = vmatprep.subr.mxu0 0.0
    %986 = vmatpush1.msra.mxu0 0.0
    %987 = vmatprep.subr.mxu0 0.0
    %988 = vmatpush1.msra.mxu0 0.0
    %989 = vmatprep.subr.mxu0 0.0
    %990 = vmatpush1.msra.mxu0 0.0
    %991 = vmatprep.subr.mxu0 0.0
    %992 = vmatpush1.msra.mxu0 0.0
    %993 = vmatprep.subr.mxu0 0.0
    %994 = vmatpush1.msra.mxu0 0.0
    %995 = vmatprep.subr.mxu0 0.0
    %996 = vmatpush1.msra.mxu0 0.0
    %997 = vmatprep.subr.mxu0 0.0
    %998 = vmatpush1.msra.mxu0 0.0
    %999 = vmatprep.subr.mxu0 0.0
    %1000 = vmatpush1.msra.mxu0 0.0
    %1001 = vmatprep.subr.mxu0 0.0
    %1002 = vmatpush1.msra.mxu0 0.0
    %1003 = vmatprep.mubr.f32.mxu0 0.0
    %1004 = vmatmul.mubr.f32.gmra.mrb[0].mxu0 %v937
    %v1005 = vpop.f32.mrb[0].mxu0
    %v1006 = vadd.f32 %v860, %v1005
    %v1007 = vpop.f32.mrb[0].mxu0
    %1008 = vdwg.mxu0
    %v1009 = vmax.f32 %v1006, 0.0
    %v1010 = vadd.f32 %v849, %v1009
    %v1011 = vsel %vm50, %v1010, 0.0
    %1012 = vadd.xlane.f32.xlu0 %v1011
    %v1013 = vpop.xlane.xlu0 %1012
    %v1014 = vmul.f32 %v1010, %v1010
    %v1015 = vsel %vm50, %v1014, 0.0
    %1016 = vadd.xlane.f32.xlu0 %v1015
    %v1017 = vpop.xlane.xlu0 %1016
    %v1018 = vmul.f32 %v1013, 0.0625
    %v1019 = vmul.f32 %v1017, 0.0625
    %v1020 = vmul.f32 %v1018, %v1018
    %v1021 = vsub.f32 %v1019, %v1020
    %v1022 = vsub.f32 %v1010, %v1018
    %v1023 = vadd.f32 %v1021, 1e-05
    %v1024 = vrsqrt.pop %v1023
    %v1025 = vmul.f32 %v1022, %v1024
    %1026 = vrot.lane.b32.xlu0 %v843, 96
    %v1027 = vpop.permute.xlu0 %1026
    %v1029 = vmul.f32 %v1025, %v1027
    %1030 = vrot.lane.b32.xlu0 %v843, 80
    %v1031 = vpop.permute.xlu0 %1030
    %v1033 = vadd.f32 %v1029, %v1031
    %1034 = vrot.lane.b32.xlu0 %v127, 64
    %v1035 = vpop.permute.xlu0 %1034
    %1036 = vrot.lane.b32.xlu0 %v132, 64
    %v1037 = vpop.permute.xlu0 %1036
    %v1040 = vmul.f32 %v843, %v1035
    %v1041 = vmul.f32 %v843, %v1037
    %v1042 = vmax.f32 %v1040, 0.0
    %v1043 = vmax.f32 %v1041, 0.0
    %vm1044 = vcmask 654848
    %v1045 = vsel %vm1044, %v1042, 0.0
    %v1046 = vrot.slane %v1045, 4
    %v1047 = vadd.f32 %v1045, %v1046
    %v1048 = vrot.slane %v1047, 2
    %v1049 = vadd.f32 %v1047, %v1048
    %v1050 = vrot.slane %v1049, 1
    %v1051 = vadd.f32 %v1049, %v1050
    %v1052 = vsel %vm1044, %v1043, 0.0
    %v1053 = vrot.slane %v1052, 4
    %v1054 = vadd.f32 %v1052, %v1053
    %v1055 = vrot.slane %v1054, 2
    %v1056 = vadd.f32 %v1054, %v1055
    %v1057 = vrot.slane %v1056, 1
    %v1058 = vadd.f32 %v1056, %v1057
    %v1059 = vrcp.pop 8.0
    %v1060 = vmul.f32 %v1051, %v1059
    %v1061 = vmul.f32 %v1058, %v1059
    %v1062 = vtanh.pop %v45
    %v1064 = vcombine.high %v1062, %v1062
    %v1065 = vlaneseq
    %v1066 = vshrl.u32 %v1065, 7
    %v1067 = vsub.s32 0, %v1066
    %v1068 = vrot.slane %v1062, %v1067
    %v1069 = vlaneseq
    %v1070 = vshrl.u32 %v1069, 7
    %v1071 = vsub.s32 0, %v1070
    %v1072 = vrot.slane %v1064, %v1071
    %vm1073 = vcmask 1041409
    %v1074 = vsel %vm1073, %v1072, %v1068
    %v1076 = vlaneseq
    %v1077 = vshrl.u32 %v1076, 7
    %v1078 = vsub.s32 1, %v1077
    %v1079 = vrot.slane %v1062, %v1078
    %v1080 = vlaneseq
    %v1081 = vshrl.u32 %v1080, 7
    %v1082 = vsub.s32 1, %v1081
    %v1083 = vrot.slane %v1064, %v1082
    %v1084 = vsel %vm1073, %v1083, %v1079
    %1085 = vrot.lane.b32.xlu0 %v1084, 16
    %v1086 = vpop.permute.xlu0 %1085
    %v1088 = vlaneseq
    %v1089 = vshrl.u32 %v1088, 7
    %v1090 = vsub.s32 2, %v1089
    %v1091 = vrot.slane %v1062, %v1090
    %v1092 = vlaneseq
    %v1093 = vshrl.u32 %v1092, 7
    %v1094 = vsub.s32 2, %v1093
    %v1095 = vrot.slane %v1064, %v1094
    %v1096 = vsel %vm1073, %v1095, %v1091
    %1097 = vrot.lane.b32.xlu0 %v1096, 32
    %v1098 = vpop.permute.xlu0 %1097
    %v1100 = vlaneseq
    %v1101 = vshrl.u32 %v1100, 7
    %v1102 = vsub.s32 3, %v1101
    %v1103 = vrot.slane %v1062, %v1102
    %v1104 = vlaneseq
    %v1105 = vshrl.u32 %v1104, 7
    %v1106 = vsub.s32 3, %v1105
    %v1107 = vrot.slane %v1064, %v1106
    %v1108 = vsel %vm1073, %v1107, %v1103
    %1109 = vrot.lane.b32.xlu0 %v1108, 48
    %v1110 = vpop.permute.xlu0 %1109
    %v1114 = vsel %vm1073, %v1061, %v1060
    %v1116 = vsel %vm50, %v1074, %v1086
    %vm1117 = vcmask 261120
    %v1118 = vsel %vm1117, %v1116, %v1098
    %vm1119 = vcmask 392192
    %v1120 = vsel %vm1119, %v1118, %v1110
    %vm1121 = vcmask 523264
    %v1122 = vsel %vm1121, %v1120, %v1114
    %v1123 = vlaneseq
    %v1124 = vshrl.u32 %v1123, 7
    %v1125 = vsub.s32 0, %v1124
    %v1126 = vrot.slane %v31, %v1125
    %vm1127 = vcmask 654336
    %v1129 = vsel %vm1127, %v1122, 0
    %1131 = vmatprep.subr.mxu0 0.0
    %1132 = vmatpush1.msra.mxu0 %v33
    %1133 = vmatprep.subr.mxu0 0.0
    %1134 = vmatpush1.msra.mxu0 %v34
    %1135 = vmatprep.subr.mxu0 0.0
    %1136 = vmatpush1.msra.mxu0 %v35
    %1137 = vmatprep.subr.mxu0 0.0
    %1138 = vmatpush1.msra.mxu0 %v36
    %1139 = vmatprep.subr.mxu0 0.0
    %1140 = vmatpush1.msra.mxu0 %v37
    %1141 = vmatprep.subr.mxu0 0.0
    %1142 = vmatpush1.msra.mxu0 %v38
    %1143 = vmatprep.subr.mxu0 0.0
    %1144 = vmatpush1.msra.mxu0 %v39
    %1145 = vmatprep.subr.mxu0 0.0
    %1146 = vmatpush1.msra.mxu0 %v40
    %1147 = vmatprep.subr.mxu0 0.0
    %1148 = vmatpush1.msra.mxu0 %v41
    %1149 = vmatprep.subr.mxu0 0.0
    %1150 = vmatpush1.msra.mxu0 %v42
    %1151 = vmatprep.subr.mxu0 0.0
    %1152 = vmatpush1.msra.mxu0 0.0
    %1153 = vmatprep.subr.mxu0 0.0
    %1154 = vmatpush1.msra.mxu0 0.0
    %1155 = vmatprep.subr.mxu0 0.0
    %1156 = vmatpush1.msra.mxu0 0.0
    %1157 = vmatprep.subr.mxu0 0.0
    %1158 = vmatpush1.msra.mxu0 0.0
    %1159 = vmatprep.subr.mxu0 0.0
    %1160 = vmatpush1.msra.mxu0 0.0
    %1161 = vmatprep.subr.mxu0 0.0
    %1162 = vmatpush1.msra.mxu0 0.0
    %1163 = vmatprep.subr.mxu0 0.0
    %1164 = vmatpush1.msra.mxu0 0.0
    %1165 = vmatprep.subr.mxu0 0.0
    %1166 = vmatpush1.msra.mxu0 0.0
    %1167 = vmatprep.subr.mxu0 0.0
    %1168 = vmatpush1.msra.mxu0 0.0
    %1169 = vmatprep.subr.mxu0 0.0
    %1170 = vmatpush1.msra.mxu0 0.0
    %1171 = vmatprep.subr.mxu0 0.0
    %1172 = vmatpush1.msra.mxu0 0.0
    %1173 = vmatprep.subr.mxu0 0.0
    %1174 = vmatpush1.msra.mxu0 0.0
    %1175 = vmatprep.subr.mxu0 0.0
    %1176 = vmatpush1.msra.mxu0 0.0
    %1177 = vmatprep.subr.mxu0 0.0
    %1178 = vmatpush1.msra.mxu0 0.0
    %1179 = vmatprep.subr.mxu0 0.0
    %1180 = vmatpush1.msra.mxu0 0.0
    %1181 = vmatprep.subr.mxu0 0.0
    %1182 = vmatpush1.msra.mxu0 0.0
    %1183 = vmatprep.subr.mxu0 0.0
    %1184 = vmatpush1.msra.mxu0 0.0
    %1185 = vmatprep.subr.mxu0 0.0
    %1186 = vmatpush1.msra.mxu0 0.0
    %1187 = vmatprep.subr.mxu0 0.0
    %1188 = vmatpush1.msra.mxu0 0.0
    %1189 = vmatprep.subr.mxu0 0.0
    %1190 = vmatpush1.msra.mxu0 0.0
    %1191 = vmatprep.subr.mxu0 0.0
    %1192 = vmatpush1.msra.mxu0 0.0
    %1193 = vmatprep.subr.mxu0 0.0
    %1194 = vmatpush1.msra.mxu0 0.0
    %1195 = vmatprep.mubr.f32.mxu0 0.0
    %1196 = vmatmul.mubr.f32.gmra.mrb[0].mxu0 %v1129
    %v1197 = vpop.f32.mrb[0].mxu0
    %v1198 = vadd.f32 %v1126, %v1197
    %v1199 = vpop.f32.mrb[0].mxu0
    %1200 = vdwg.mxu0
    %v1201 = vxor.u32 %v1198, 2147483648
    %v1202 = vmul.f32 %v1201, 1.442695
    %v1203 = vpow.pop %v1202
    %v1204 = vadd.f32 %v1203, 1.0
    %v1205 = vrcp.pop %v1204
    %v1206 = vmul.f32 1.0, %v1205
    %v1207 = vtanh.pop %v1033
    %v1209 = vcombine.high %v1207, %v1207
    %v1210 = vcombine.high %v45, %v45
    %v1211 = vlaneseq
    %v1212 = vshrl.u32 %v1211, 7
    %v1213 = vsub.s32 0, %v1212
    %v1214 = vrot.slane %v1207, %v1213
    %v1215 = vlaneseq
    %v1216 = vshrl.u32 %v1215, 7
    %v1217 = vsub.s32 0, %v1216
    %v1218 = vrot.slane %v1209, %v1217
    %v1219 = vsel %vm1073, %v1218, %v1214
    %v1221 = vmul.f32 %v1206, %v1219
    %v1222 = vlaneseq
    %v1223 = vshrl.u32 %v1222, 7
    %v1224 = vsub.s32 0, %v1223
    %v1225 = vrot.slane %v45, %v1224
    %v1226 = vlaneseq
    %v1227 = vshrl.u32 %v1226, 7
    %v1228 = vsub.s32 0, %v1227
    %v1229 = vrot.slane %v1210, %v1228
    %v1230 = vsel %vm1073, %v1229, %v1225
    %1231 = vrot.lane.b32.xlu0 %v1230, 16
    %v1232 = vpop.permute.xlu0 %1231
    %v1234 = vmul.f32 %v1206, %v1232
    %1236 = vrot.lane.b32.xlu0 %v1234, 112
    %v1237 = vpop.permute.xlu0 %1236
    %v1239 = vadd.f32 %v1221, %v1237
    %v1240 = vlaneseq
    %v1241 = vshrl.u32 %v1240, 7
    %v1242 = vsub.s32 1, %v1241
    %v1243 = vrot.slane %v1207, %v1242
    %v1244 = vlaneseq
    %v1245 = vshrl.u32 %v1244, 7
    %v1246 = vsub.s32 1, %v1245
    %v1247 = vrot.slane %v1209, %v1246
    %v1248 = vsel %vm1073, %v1247, %v1243
    %1249 = vrot.lane.b32.xlu0 %v1248, 32
    %v1250 = vpop.permute.xlu0 %1249
    %v1252 = vmul.f32 %v1206, %v1250
    %v1253 = vlaneseq
    %v1254 = vshrl.u32 %v1253, 7
    %v1255 = vsub.s32 1, %v1254
    %v1256 = vrot.slane %v45, %v1255
    %v1257 = vlaneseq
    %v1258 = vshrl.u32 %v1257, 7
    %v1259 = vsub.s32 1, %v1258
    %v1260 = vrot.slane %v1210, %v1259
    %v1261 = vsel %vm1073, %v1260, %v1256
    %1262 = vrot.lane.b32.xlu0 %v1261, 48
    %v1263 = vpop.permute.xlu0 %1262
    %v1265 = vmul.f32 %v1206, %v1263
    %1267 = vrot.lane.b32.xlu0 %v1265, 112
    %v1268 = vpop.permute.xlu0 %1267
    %v1270 = vadd.f32 %v1252, %v1268
    %v1271 = vlaneseq
    %v1272 = vshrl.u32 %v1271, 7
    %v1273 = vsub.s32 2, %v1272
    %v1274 = vrot.slane %v1207, %v1273
    %v1275 = vlaneseq
    %v1276 = vshrl.u32 %v1275, 7
    %v1277 = vsub.s32 2, %v1276
    %v1278 = vrot.slane %v1209, %v1277
    %v1279 = vsel %vm1073, %v1278, %v1274
    %1280 = vrot.lane.b32.xlu0 %v1279, 64
    %v1281 = vpop.permute.xlu0 %1280
    %v1283 = vmul.f32 %v1206, %v1281
    %v1284 = vlaneseq
    %v1285 = vshrl.u32 %v1284, 7
    %v1286 = vsub.s32 2, %v1285
    %v1287 = vrot.slane %v45, %v1286
    %v1288 = vlaneseq
    %v1289 = vshrl.u32 %v1288, 7
    %v1290 = vsub.s32 2, %v1289
    %v1291 = vrot.slane %v1210, %v1290
    %v1292 = vsel %vm1073, %v1291, %v1287
    %1293 = vrot.lane.b32.xlu0 %v1292, 80
    %v1294 = vpop.permute.xlu0 %1293
    %v1296 = vmul.f32 %v1206, %v1294
    %1298 = vrot.lane.b32.xlu0 %v1296, 112
    %v1299 = vpop.permute.xlu0 %1298
    %v1301 = vadd.f32 %v1283, %v1299
    %v1302 = vlaneseq
    %v1303 = vshrl.u32 %v1302, 7
    %v1304 = vsub.s32 3, %v1303
    %v1305 = vrot.slane %v1207, %v1304
    %v1306 = vlaneseq
    %v1307 = vshrl.u32 %v1306, 7
    %v1308 = vsub.s32 3, %v1307
    %v1309 = vrot.slane %v1209, %v1308
    %v1310 = vsel %vm1073, %v1309, %v1305
    %1311 = vrot.lane.b32.xlu0 %v1310, 96
    %v1312 = vpop.permute.xlu0 %1311
    %v1314 = vmul.f32 %v1206, %v1312
    %v1315 = vlaneseq
    %v1316 = vshrl.u32 %v1315, 7
    %v1317 = vsub.s32 3, %v1316
    %v1318 = vrot.slane %v45, %v1317
    %v1319 = vlaneseq
    %v1320 = vshrl.u32 %v1319, 7
    %v1321 = vsub.s32 3, %v1320
    %v1322 = vrot.slane %v1210, %v1321
    %v1323 = vsel %vm1073, %v1322, %v1318
    %1324 = vrot.lane.b32.xlu0 %v1323, 112
    %v1325 = vpop.permute.xlu0 %1324
    %v1327 = vmul.f32 %v1206, %v1325
    %1329 = vrot.lane.b32.xlu0 %v1327, 112
    %v1330 = vpop.permute.xlu0 %1329
    %v1332 = vadd.f32 %v1314, %v1330
    %v1335 = vunpack.c.l.s4 1966171168
    %v1336 = vunpack.c.0.s8 %v1335
    %v1337 = vlaneseq
    %v1338 = vshrl.u32 %v1337, 7
    %v1339 = vsub.s32 %v1336, %v1338
    %v1340 = vrot.slane %v1239, %v1339
    %v1341 = vcombine.high %v1340, %v1340
    %v1343 = vunpack.c.l.s4 1966171168
    %v1344 = vunpack.c.0.s8 %v1343
    %v1345 = vlaneseq
    %v1346 = vshrl.u32 %v1345, 7
    %v1347 = vsub.s32 %v1344, %v1346
    %v1348 = vrot.slane %v1340, %v1347
    %v1350 = vunpack.c.l.s4 1966171168
    %v1351 = vunpack.c.0.s8 %v1350
    %v1352 = vlaneseq
    %v1353 = vshrl.u32 %v1352, 7
    %v1354 = vsub.s32 %v1351, %v1353
    %v1355 = vrot.slane %v1341, %v1354
    %v1360 = vunpack.c.l.s4 1966171168
    %v1361 = vunpack.c.0.s8 %v1360
    %v1362 = vlaneseq
    %v1363 = vshrl.u32 %v1362, 7
    %v1364 = vsub.s32 %v1361, %v1363
    %v1365 = vrot.slane %v1270, %v1364
    %v1366 = vcombine.high %v1365, %v1365
    %v1368 = vunpack.c.l.s4 1966171168
    %v1369 = vunpack.c.0.s8 %v1368
    %v1370 = vlaneseq
    %v1371 = vshrl.u32 %v1370, 7
    %v1372 = vsub.s32 %v1369, %v1371
    %v1373 = vrot.slane %v1365, %v1372
    %v1375 = vunpack.c.l.s4 1966171168
    %v1376 = vunpack.c.0.s8 %v1375
    %v1377 = vlaneseq
    %v1378 = vshrl.u32 %v1377, 7
    %v1379 = vsub.s32 %v1376, %v1378
    %v1380 = vrot.slane %v1366, %v1379
    %v1383 = vunpack.c.l.s4 1966171168
    %v1384 = vunpack.c.0.s8 %v1383
    %v1385 = vlaneseq
    %v1386 = vshrl.u32 %v1385, 7
    %v1387 = vsub.s32 %v1384, %v1386
    %v1388 = vrot.slane %v1301, %v1387
    %v1389 = vcombine.high %v1388, %v1388
    %v1391 = vunpack.c.l.s4 1966171168
    %v1392 = vunpack.c.0.s8 %v1391
    %v1393 = vlaneseq
    %v1394 = vshrl.u32 %v1393, 7
    %v1395 = vsub.s32 %v1392, %v1394
    %v1396 = vrot.slane %v1388, %v1395
    %v1398 = vunpack.c.l.s4 1966171168
    %v1399 = vunpack.c.0.s8 %v1398
    %v1400 = vlaneseq
    %v1401 = vshrl.u32 %v1400, 7
    %v1402 = vsub.s32 %v1399, %v1401
    %v1403 = vrot.slane %v1389, %v1402
    %v1406 = vunpack.c.l.s4 1966171168
    %v1407 = vunpack.c.0.s8 %v1406
    %v1408 = vlaneseq
    %v1409 = vshrl.u32 %v1408, 7
    %v1410 = vsub.s32 %v1407, %v1409
    %v1411 = vrot.slane %v1332, %v1410
    %v1412 = vcombine.high %v1411, %v1411
    %v1414 = vunpack.c.l.s4 1966171168
    %v1415 = vunpack.c.0.s8 %v1414
    %v1416 = vlaneseq
    %v1417 = vshrl.u32 %v1416, 7
    %v1418 = vsub.s32 %v1415, %v1417
    %v1419 = vrot.slane %v1411, %v1418
    %v1421 = vunpack.c.l.s4 1966171168
    %v1422 = vunpack.c.0.s8 %v1421
    %v1423 = vlaneseq
    %v1424 = vshrl.u32 %v1423, 7
    %v1425 = vsub.s32 %v1422, %v1424
    %v1426 = vrot.slane %v1412, %v1425
    %v1427 = vlaneseq
    %v1428 = vshrl.u32 %v1427, 7
    %v1429 = vsub.s32 0, %v1428
    %v1430 = vrot.slane %v1373, %v1429
    %v1431 = vlaneseq
    %v1432 = vshrl.u32 %v1431, 7
    %v1433 = vsub.s32 0, %v1432
    %v1434 = vrot.slane %v1380, %v1433
    %1435 = vrot.lane.b32.xlu0 %v1430, 96
    %v1436 = vpop.permute.xlu0 %1435
    %1437 = vrot.lane.b32.xlu0 %v1434, 96
    %v1438 = vpop.permute.xlu0 %1437
    %v1441 = vlaneseq
    %v1442 = vshrl.u32 %v1441, 7
    %v1443 = vsub.s32 0, %v1442
    %v1444 = vrot.slane %v1396, %v1443
    %v1445 = vlaneseq
    %v1446 = vshrl.u32 %v1445, 7
    %v1447 = vsub.s32 0, %v1446
    %v1448 = vrot.slane %v1403, %v1447
    %1449 = vrot.lane.b32.xlu0 %v1444, 64
    %v1450 = vpop.permute.xlu0 %1449
    %1451 = vrot.lane.b32.xlu0 %v1448, 64
    %v1452 = vpop.permute.xlu0 %1451
    %v1455 = vlaneseq
    %v1456 = vshrl.u32 %v1455, 7
    %v1457 = vsub.s32 0, %v1456
    %v1458 = vrot.slane %v1419, %v1457
    %v1459 = vlaneseq
    %v1460 = vshrl.u32 %v1459, 7
    %v1461 = vsub.s32 0, %v1460
    %v1462 = vrot.slane %v1426, %v1461
    %1463 = vrot.lane.b32.xlu0 %v1458, 32
    %v1464 = vpop.permute.xlu0 %1463
    %1465 = vrot.lane.b32.xlu0 %v1462, 32
    %v1466 = vpop.permute.xlu0 %1465
    %vm1469 = vcmask 1040384
    %v1470 = vsel %vm1469, %v1348, %v1436
    %v1471 = vsel %vm1469, %v1355, %v1438
    %vm1472 = vcmask 1041408
    %v1473 = vsel %vm1472, %v1470, %v1450
    %v1474 = vsel %vm1472, %v1471, %v1452
    %vm1475 = vcmask 1042432
    %v1476 = vsel %vm1475, %v1473, %v1464
    %v1477 = vsel %vm1475, %v1474, %v1466
    %v1480 = vcombine.low %v1476, %v1477
    %1481 = vrot.lane.b32.xlu0 %v28, 32
    %v1482 = vpop.permute.xlu0 %1481
    %1483 = vrot.lane.b32.xlu0 %v29, 32
    %v1484 = vpop.permute.xlu0 %1483
    %1487 = vrot.lane.b32.xlu0 %v49, 32
    %v1488 = vpop.permute.xlu0 %1487
    %v1490 = vsel %vm50, %v1480, 0
    %1492 = vmatprep.subr.mxu0 0.0
    %1493 = vmatpush1.msra.mxu0 %v1482
    %1494 = vmatprep.subr.mxu0 0.0
    %1495 = vmatpush1.msra.mxu0 %v1484
    %1496 = vmatprep.subr.mxu0 0.0
    %1497 = vmatpush1.msra.mxu0 0.0
    %1498 = vmatprep.subr.mxu0 0.0
    %1499 = vmatpush1.msra.mxu0 0.0
    %1500 = vmatprep.subr.mxu0 0.0
    %1501 = vmatpush1.msra.mxu0 0.0
    %1502 = vmatprep.subr.mxu0 0.0
    %1503 = vmatpush1.msra.mxu0 0.0
    %1504 = vmatprep.subr.mxu0 0.0
    %1505 = vmatpush1.msra.mxu0 0.0
    %1506 = vmatprep.subr.mxu0 0.0
    %1507 = vmatpush1.msra.mxu0 0.0
    %1508 = vmatprep.subr.mxu0 0.0
    %1509 = vmatpush1.msra.mxu0 0.0
    %1510 = vmatprep.subr.mxu0 0.0
    %1511 = vmatpush1.msra.mxu0 0.0
    %1512 = vmatprep.subr.mxu0 0.0
    %1513 = vmatpush1.msra.mxu0 0.0
    %1514 = vmatprep.subr.mxu0 0.0
    %1515 = vmatpush1.msra.mxu0 0.0
    %1516 = vmatprep.subr.mxu0 0.0
    %1517 = vmatpush1.msra.mxu0 0.0
    %1518 = vmatprep.subr.mxu0 0.0
    %1519 = vmatpush1.msra.mxu0 0.0
    %1520 = vmatprep.subr.mxu0 0.0
    %1521 = vmatpush1.msra.mxu0 0.0
    %1522 = vmatprep.subr.mxu0 0.0
    %1523 = vmatpush1.msra.mxu0 0.0
    %1524 = vmatprep.subr.mxu0 0.0
    %1525 = vmatpush1.msra.mxu0 0.0
    %1526 = vmatprep.subr.mxu0 0.0
    %1527 = vmatpush1.msra.mxu0 0.0
    %1528 = vmatprep.subr.mxu0 0.0
    %1529 = vmatpush1.msra.mxu0 0.0
    %1530 = vmatprep.subr.mxu0 0.0
    %1531 = vmatpush1.msra.mxu0 0.0
    %1532 = vmatprep.subr.mxu0 0.0
    %1533 = vmatpush1.msra.mxu0 0.0
    %1534 = vmatprep.subr.mxu0 0.0
    %1535 = vmatpush1.msra.mxu0 0.0
    %1536 = vmatprep.subr.mxu0 0.0
    %1537 = vmatpush1.msra.mxu0 0.0
    %1538 = vmatprep.subr.mxu0 0.0
    %1539 = vmatpush1.msra.mxu0 0.0
    %1540 = vmatprep.subr.mxu0 0.0
    %1541 = vmatpush1.msra.mxu0 0.0
    %1542 = vmatprep.subr.mxu0 0.0
    %1543 = vmatpush1.msra.mxu0 0.0
    %1544 = vmatprep.subr.mxu0 0.0
    %1545 = vmatpush1.msra.mxu0 0.0
    %1546 = vmatprep.subr.mxu0 0.0
    %1547 = vmatpush1.msra.mxu0 0.0
    %1548 = vmatprep.subr.mxu0 0.0
    %1549 = vmatpush1.msra.mxu0 0.0
    %1550 = vmatprep.subr.mxu0 0.0
    %1551 = vmatpush1.msra.mxu0 0.0
    %1552 = vmatprep.subr.mxu0 0.0
    %1553 = vmatpush1.msra.mxu0 0.0
    %1554 = vmatprep.subr.mxu0 0.0
    %1555 = vmatpush1.msra.mxu0 0.0
    %1556 = vmatprep.mubr.f32.mxu0 0.0
    %1557 = vmatmul.mubr.f32.gmra.mrb[0].mxu0 %v1490
    %v1558 = vpop.f32.mrb[0].mxu0
    %v1559 = vadd.f32 %v1488, %v1558
    %v1560 = vpop.f32.mrb[0].mxu0
    %1561 = vdwg.mxu0
    %v1563 = vcombine.high %v1559, %v1559
    %1564 = vrot.lane.b32.xlu0 %v127, 112
    %v1565 = vpop.permute.xlu0 %1564
    %v1566 = vsel %vm147, %v1565, 0
    %v1568 = vsel %vm147, %v1559, 0
    %1570 = vmatprep.subr.mxu0 0.0
    %1571 = vmatpush1.xpose.msra.mxu0 %v1568
    %1572 = vmatprep.subr.mxu0 0.0
    %1573 = vmatpush1.xpose.msra.mxu0 0.0
    %1574 = vmatprep.subr.mxu0 0.0
    %1575 = vmatpush1.xpose.msra.mxu0 0.0
    %1576 = vmatprep.subr.mxu0 0.0
    %1577 = vmatpush1.xpose.msra.mxu0 0.0
    %1578 = vmatprep.subr.mxu0 0.0
    %1579 = vmatpush1.xpose.msra.mxu0 0.0
    %1580 = vmatprep.subr.mxu0 0.0
    %1581 = vmatpush1.xpose.msra.mxu0 0.0
    %1582 = vmatprep.subr.mxu0 0.0
    %1583 = vmatpush1.xpose.msra.mxu0 0.0
    %1584 = vmatprep.subr.mxu0 0.0
    %1585 = vmatpush1.xpose.msra.mxu0 0.0
    %1586 = vmatprep.subr.mxu0 0.0
    %1587 = vmatpush1.xpose.msra.mxu0 0.0
    %1588 = vmatprep.subr.mxu0 0.0
    %1589 = vmatpush1.xpose.msra.mxu0 0.0
    %1590 = vmatprep.subr.mxu0 0.0
    %1591 = vmatpush1.xpose.msra.mxu0 0.0
    %1592 = vmatprep.subr.mxu0 0.0
    %1593 = vmatpush1.xpose.msra.mxu0 0.0
    %1594 = vmatprep.subr.mxu0 0.0
    %1595 = vmatpush1.xpose.msra.mxu0 0.0
    %1596 = vmatprep.subr.mxu0 0.0
    %1597 = vmatpush1.xpose.msra.mxu0 0.0
    %1598 = vmatprep.subr.mxu0 0.0
    %1599 = vmatpush1.xpose.msra.mxu0 0.0
    %1600 = vmatprep.subr.mxu0 0.0
    %1601 = vmatpush1.xpose.msra.mxu0 0.0
    %1602 = vmatprep.subr.mxu0 0.0
    %1603 = vmatpush1.xpose.msra.mxu0 0.0
    %1604 = vmatprep.subr.mxu0 0.0
    %1605 = vmatpush1.xpose.msra.mxu0 0.0
    %1606 = vmatprep.subr.mxu0 0.0
    %1607 = vmatpush1.xpose.msra.mxu0 0.0
    %1608 = vmatprep.subr.mxu0 0.0
    %1609 = vmatpush1.xpose.msra.mxu0 0.0
    %1610 = vmatprep.subr.mxu0 0.0
    %1611 = vmatpush1.xpose.msra.mxu0 0.0
    %1612 = vmatprep.subr.mxu0 0.0
    %1613 = vmatpush1.xpose.msra.mxu0 0.0
    %1614 = vmatprep.subr.mxu0 0.0
    %1615 = vmatpush1.xpose.msra.mxu0 0.0
    %1616 = vmatprep.subr.mxu0 0.0
    %1617 = vmatpush1.xpose.msra.mxu0 0.0
    %1618 = vmatprep.subr.mxu0 0.0
    %1619 = vmatpush1.xpose.msra.mxu0 0.0
    %1620 = vmatprep.subr.mxu0 0.0
    %1621 = vmatpush1.xpose.msra.mxu0 0.0
    %1622 = vmatprep.subr.mxu0 0.0
    %1623 = vmatpush1.xpose.msra.mxu0 0.0
    %1624 = vmatprep.subr.mxu0 0.0
    %1625 = vmatpush1.xpose.msra.mxu0 0.0
    %1626 = vmatprep.subr.mxu0 0.0
    %1627 = vmatpush1.xpose.msra.mxu0 0.0
    %1628 = vmatprep.subr.mxu0 0.0
    %1629 = vmatpush1.xpose.msra.mxu0 0.0
    %1630 = vmatprep.subr.mxu0 0.0
    %1631 = vmatpush1.xpose.msra.mxu0 0.0
    %1632 = vmatprep.subr.mxu0 0.0
    %1633 = vmatpush1.xpose.msra.mxu0 0.0
    %1634 = vmatprep.mubr.f32.mxu0 0.0
    %1635 = vmatmul.mubr.f32.gmra.mrb[0].mxu0 %v1566
    %v1636 = vpop.f32.mrb[0].mxu0
    %v1637 = vadd.f32 0.0, %v1636
    %v1638 = vpop.f32.mrb[0].mxu0
    %1639 = vdwg.mxu0
    %1640 = vrot.lane.b32.xlu0 %v132, 112
    %v1641 = vpop.permute.xlu0 %1640
    %v1642 = vsel %vm147, %v1641, 0
    %v1644 = vsel %vm147, %v1563, 0
    %1646 = vmatprep.subr.mxu0 0.0
    %1647 = vmatpush1.xpose.msra.mxu0 %v1644
    %1648 = vmatprep.subr.mxu0 0.0
    %1649 = vmatpush1.xpose.msra.mxu0 0.0
    %1650 = vmatprep.subr.mxu0 0.0
    %1651 = vmatpush1.xpose.msra.mxu0 0.0
    %1652 = vmatprep.subr.mxu0 0.0
    %1653 = vmatpush1.xpose.msra.mxu0 0.0
    %1654 = vmatprep.subr.mxu0 0.0
    %1655 = vmatpush1.xpose.msra.mxu0 0.0
    %1656 = vmatprep.subr.mxu0 0.0
    %1657 = vmatpush1.xpose.msra.mxu0 0.0
    %1658 = vmatprep.subr.mxu0 0.0
    %1659 = vmatpush1.xpose.msra.mxu0 0.0
    %1660 = vmatprep.subr.mxu0 0.0
    %1661 = vmatpush1.xpose.msra.mxu0 0.0
    %1662 = vmatprep.subr.mxu0 0.0
    %1663 = vmatpush1.xpose.msra.mxu0 0.0
    %1664 = vmatprep.subr.mxu0 0.0
    %1665 = vmatpush1.xpose.msra.mxu0 0.0
    %1666 = vmatprep.subr.mxu0 0.0
    %1667 = vmatpush1.xpose.msra.mxu0 0.0
    %1668 = vmatprep.subr.mxu0 0.0
    %1669 = vmatpush1.xpose.msra.mxu0 0.0
    %1670 = vmatprep.subr.mxu0 0.0
    %1671 = vmatpush1.xpose.msra.mxu0 0.0
    %1672 = vmatprep.subr.mxu0 0.0
    %1673 = vmatpush1.xpose.msra.mxu0 0.0
    %1674 = vmatprep.subr.mxu0 0.0
    %1675 = vmatpush1.xpose.msra.mxu0 0.0
    %1676 = vmatprep.subr.mxu0 0.0
    %1677 = vmatpush1.xpose.msra.mxu0 0.0
    %1678 = vmatprep.subr.mxu0 0.0
    %1679 = vmatpush1.xpose.msra.mxu0 0.0
    %1680 = vmatprep.subr.mxu0 0.0
    %1681 = vmatpush1.xpose.msra.mxu0 0.0
    %1682 = vmatprep.subr.mxu0 0.0
    %1683 = vmatpush1.xpose.msra.mxu0 0.0
    %1684 = vmatprep.subr.mxu0 0.0
    %1685 = vmatpush1.xpose.msra.mxu0 0.0
    %1686 = vmatprep.subr.mxu0 0.0
    %1687 = vmatpush1.xpose.msra.mxu0 0.0
    %1688 = vmatprep.subr.mxu0 0.0
    %1689 = vmatpush1.xpose.msra.mxu0 0.0
    %1690 = vmatprep.subr.mxu0 0.0
    %1691 = vmatpush1.xpose.msra.mxu0 0.0
    %1692 = vmatprep.subr.mxu0 0.0
    %1693 = vmatpush1.xpose.msra.mxu0 0.0
    %1694 = vmatprep.subr.mxu0 0.0
    %1695 = vmatpush1.xpose.msra.mxu0 0.0
    %1696 = vmatprep.subr.mxu0 0.0
    %1697 = vmatpush1.xpose.msra.mxu0 0.0
    %1698 = vmatprep.subr.mxu0 0.0
    %1699 = vmatpush1.xpose.msra.mxu0 0.0
    %1700 = vmatprep.subr.mxu0 0.0
    %1701 = vmatpush1.xpose.msra.mxu0 0.0
    %1702 = vmatprep.subr.mxu0 0.0
    %1703 = vmatpush1.xpose.msra.mxu0 0.0
    %1704 = vmatprep.subr.mxu0 0.0
    %1705 = vmatpush1.xpose.msra.mxu0 0.0
    %1706 = vmatprep.subr.mxu0 0.0
    %1707 = vmatpush1.xpose.msra.mxu0 0.0
    %1708 = vmatprep.subr.mxu0 0.0
    %1709 = vmatpush1.xpose.msra.mxu0 0.0
    %1710 = vmatprep.mubr.f32.mxu0 0.0
    %1711 = vmatmul.mubr.f32.gmra.mrb[0].mxu0 %v1642
    %v1712 = vpop.f32.mrb[0].mxu0
    %v1713 = vadd.f32 0.0, %v1712
    %v1714 = vpop.f32.mrb[0].mxu0
    %1715 = vdwg.mxu0
    %vm1716 = vcmask 31744
    %v1717 = vsel %vm1716, %v1637, -inf
    %1718 = vmax.xlane.f32.xlu0 %v1717
    %v1719 = vpop.xlane.xlu0 %1718
    %v1720 = vsel %vm1716, %v1713, -inf
    %1721 = vmax.xlane.f32.xlu0 %v1720
    %v1722 = vpop.xlane.xlu0 %1721
    %v1723 = vsub.f32 %v1637, %v1719
    %v1724 = vsub.f32 %v1713, %v1722
    %v1725 = vmul.f32 %v1723, 1.442695
    %v1726 = vpow.pop %v1725
    %v1727 = vmul.f32 %v1724, 1.442695
    %v1728 = vpow.pop %v1727
    %v1729 = vsel %vm1716, %v1726, 0.0
    %1730 = vadd.xlane.f32.xlu0 %v1729
    %v1731 = vpop.xlane.xlu0 %1730
    %v1732 = vsel %vm1716, %v1728, 0.0
    %1733 = vadd.xlane.f32.xlu0 %v1732
    %v1734 = vpop.xlane.xlu0 %1733
    %v1735 = vrcp.pop %v1731
    %v1736 = vrcp.pop %v1734
    %v1737 = vmul.f32 %v1726, %v1735
    %v1738 = vmul.f32 %v1728, %v1736
    %1739 = vrot.lane.b32.xlu0 %v1559, 112
    %v1740 = vpop.permute.xlu0 %1739
    %v1742 = vsel %vm1716, %v1737, 0
    %vm1744 = vcmask 1043456
    %v1745 = vsel %vm1744, %v1740, 0
    %1747 = vmatprep.subr.mxu0 0.0
    %1748 = vmatpush1.msra.mxu0 %v1745
    %1749 = vmatprep.subr.mxu0 0.0
    %1750 = vmatpush1.msra.mxu0 0.0
    %1751 = vmatprep.subr.mxu0 0.0
    %1752 = vmatpush1.msra.mxu0 0.0
    %1753 = vmatprep.subr.mxu0 0.0
    %1754 = vmatpush1.msra.mxu0 0.0
    %1755 = vmatprep.subr.mxu0 0.0
    %1756 = vmatpush1.msra.mxu0 0.0
    %1757 = vmatprep.subr.mxu0 0.0
    %1758 = vmatpush1.msra.mxu0 0.0
    %1759 = vmatprep.subr.mxu0 0.0
    %1760 = vmatpush1.msra.mxu0 0.0
    %1761 = vmatprep.subr.mxu0 0.0
    %1762 = vmatpush1.msra.mxu0 0.0
    %1763 = vmatprep.subr.mxu0 0.0
    %1764 = vmatpush1.msra.mxu0 0.0
    %1765 = vmatprep.subr.mxu0 0.0
    %1766 = vmatpush1.msra.mxu0 0.0
    %1767 = vmatprep.subr.mxu0 0.0
    %1768 = vmatpush1.msra.mxu0 0.0
    %1769 = vmatprep.subr.mxu0 0.0
    %1770 = vmatpush1.msra.mxu0 0.0
    %1771 = vmatprep.subr.mxu0 0.0
    %1772 = vmatpush1.msra.mxu0 0.0
    %1773 = vmatprep.subr.mxu0 0.0
    %1774 = vmatpush1.msra.mxu0 0.0
    %1775 = vmatprep.subr.mxu0 0.0
    %1776 = vmatpush1.msra.mxu0 0.0
    %1777 = vmatprep.subr.mxu0 0.0
    %1778 = vmatpush1.msra.mxu0 0.0
    %1779 = vmatprep.subr.mxu0 0.0
    %1780 = vmatpush1.msra.mxu0 0.0
    %1781 = vmatprep.subr.mxu0 0.0
    %1782 = vmatpush1.msra.mxu0 0.0
    %1783 = vmatprep.subr.mxu0 0.0
    %1784 = vmatpush1.msra.mxu0 0.0
    %1785 = vmatprep.subr.mxu0 0.0
    %1786 = vmatpush1.msra.mxu0 0.0
    %1787 = vmatprep.subr.mxu0 0.0
    %1788 = vmatpush1.msra.mxu0 0.0
    %1789 = vmatprep.subr.mxu0 0.0
    %1790 = vmatpush1.msra.mxu0 0.0
    %1791 = vmatprep.subr.mxu0 0.0
    %1792 = vmatpush1.msra.mxu0 0.0
    %1793 = vmatprep.subr.mxu0 0.0
    %1794 = vmatpush1.msra.mxu0 0.0
    %1795 = vmatprep.subr.mxu0 0.0
    %1796 = vmatpush1.msra.mxu0 0.0
    %1797 = vmatprep.subr.mxu0 0.0
    %1798 = vmatpush1.msra.mxu0 0.0
    %1799 = vmatprep.subr.mxu0 0.0
    %1800 = vmatpush1.msra.mxu0 0.0
    %1801 = vmatprep.subr.mxu0 0.0
    %1802 = vmatpush1.msra.mxu0 0.0
    %1803 = vmatprep.subr.mxu0 0.0
    %1804 = vmatpush1.msra.mxu0 0.0
    %1805 = vmatprep.subr.mxu0 0.0
    %1806 = vmatpush1.msra.mxu0 0.0
    %1807 = vmatprep.subr.mxu0 0.0
    %1808 = vmatpush1.msra.mxu0 0.0
    %1809 = vmatprep.subr.mxu0 0.0
    %1810 = vmatpush1.msra.mxu0 0.0
    %1811 = vmatprep.mubr.f32.mxu0 0.0
    %1812 = vmatmul.mubr.f32.gmra.mrb[0].mxu0 %v1742
    %v1813 = vpop.f32.mrb[0].mxu0
    %v1814 = vadd.f32 0.0, %v1813
    %v1815 = vpop.f32.mrb[0].mxu0
    %1816 = vdwg.mxu0
    %1817 = vrot.lane.b32.xlu0 %v1563, 112
    %v1818 = vpop.permute.xlu0 %1817
    %v1820 = vsel %vm1716, %v1738, 0
    %v1822 = vsel %vm1744, %v1818, 0
    %1824 = vmatprep.subr.mxu0 0.0
    %1825 = vmatpush1.msra.mxu0 %v1822
    %1826 = vmatprep.subr.mxu0 0.0
    %1827 = vmatpush1.msra.mxu0 0.0
    %1828 = vmatprep.subr.mxu0 0.0
    %1829 = vmatpush1.msra.mxu0 0.0
    %1830 = vmatprep.subr.mxu0 0.0
    %1831 = vmatpush1.msra.mxu0 0.0
    %1832 = vmatprep.subr.mxu0 0.0
    %1833 = vmatpush1.msra.mxu0 0.0
    %1834 = vmatprep.subr.mxu0 0.0
    %1835 = vmatpush1.msra.mxu0 0.0
    %1836 = vmatprep.subr.mxu0 0.0
    %1837 = vmatpush1.msra.mxu0 0.0
    %1838 = vmatprep.subr.mxu0 0.0
    %1839 = vmatpush1.msra.mxu0 0.0
    %1840 = vmatprep.subr.mxu0 0.0
    %1841 = vmatpush1.msra.mxu0 0.0
    %1842 = vmatprep.subr.mxu0 0.0
    %1843 = vmatpush1.msra.mxu0 0.0
    %1844 = vmatprep.subr.mxu0 0.0
    %1845 = vmatpush1.msra.mxu0 0.0
    %1846 = vmatprep.subr.mxu0 0.0
    %1847 = vmatpush1.msra.mxu0 0.0
    %1848 = vmatprep.subr.mxu0 0.0
    %1849 = vmatpush1.msra.mxu0 0.0
    %1850 = vmatprep.subr.mxu0 0.0
    %1851 = vmatpush1.msra.mxu0 0.0
    %1852 = vmatprep.subr.mxu0 0.0
    %1853 = vmatpush1.msra.mxu0 0.0
    %1854 = vmatprep.subr.mxu0 0.0
    %1855 = vmatpush1.msra.mxu0 0.0
    %1856 = vmatprep.subr.mxu0 0.0
    %1857 = vmatpush1.msra.mxu0 0.0
    %1858 = vmatprep.subr.mxu0 0.0
    %1859 = vmatpush1.msra.mxu0 0.0
    %1860 = vmatprep.subr.mxu0 0.0
    %1861 = vmatpush1.msra.mxu0 0.0
    %1862 = vmatprep.subr.mxu0 0.0
    %1863 = vmatpush1.msra.mxu0 0.0
    %1864 = vmatprep.subr.mxu0 0.0
    %1865 = vmatpush1.msra.mxu0 0.0
    %1866 = vmatprep.subr.mxu0 0.0
    %1867 = vmatpush1.msra.mxu0 0.0
    %1868 = vmatprep.subr.mxu0 0.0
    %1869 = vmatpush1.msra.mxu0 0.0
    %1870 = vmatprep.subr.mxu0 0.0
    %1871 = vmatpush1.msra.mxu0 0.0
    %1872 = vmatprep.subr.mxu0 0.0
    %1873 = vmatpush1.msra.mxu0 0.0
    %1874 = vmatprep.subr.mxu0 0.0
    %1875 = vmatpush1.msra.mxu0 0.0
    %1876 = vmatprep.subr.mxu0 0.0
    %1877 = vmatpush1.msra.mxu0 0.0
    %1878 = vmatprep.subr.mxu0 0.0
    %1879 = vmatpush1.msra.mxu0 0.0
    %1880 = vmatprep.subr.mxu0 0.0
    %1881 = vmatpush1.msra.mxu0 0.0
    %1882 = vmatprep.subr.mxu0 0.0
    %1883 = vmatpush1.msra.mxu0 0.0
    %1884 = vmatprep.subr.mxu0 0.0
    %1885 = vmatpush1.msra.mxu0 0.0
    %1886 = vmatprep.subr.mxu0 0.0
    %1887 = vmatpush1.msra.mxu0 0.0
    %1888 = vmatprep.mubr.f32.mxu0 0.0
    %1889 = vmatmul.mubr.f32.gmra.mrb[0].mxu0 %v1820
    %v1890 = vpop.f32.mrb[0].mxu0
    %v1891 = vadd.f32 0.0, %v1890
    %v1892 = vpop.f32.mrb[0].mxu0
    %1893 = vdwg.mxu0
    %1894 = vrot.lane.b32.xlu0 %v127, 104
    %v1895 = vpop.permute.xlu0 %1894
    %1896 = vrot.lane.b32.xlu0 %v1559, 120
    %v1897 = vpop.permute.xlu0 %1896
    %v1898 = vsel %vm147, %v1895, 0
    %v1900 = vsel %vm147, %v1897, 0
    %1902 = vmatprep.subr.mxu0 0.0
    %1903 = vmatpush1.xpose.msra.mxu0 %v1900
    %1904 = vmatprep.subr.mxu0 0.0
    %1905 = vmatpush1.xpose.msra.mxu0 0.0
    %1906 = vmatprep.subr.mxu0 0.0
    %1907 = vmatpush1.xpose.msra.mxu0 0.0
    %1908 = vmatprep.subr.mxu0 0.0
    %1909 = vmatpush1.xpose.msra.mxu0 0.0
    %1910 = vmatprep.subr.mxu0 0.0
    %1911 = vmatpush1.xpose.msra.mxu0 0.0
    %1912 = vmatprep.subr.mxu0 0.0
    %1913 = vmatpush1.xpose.msra.mxu0 0.0
    %1914 = vmatprep.subr.mxu0 0.0
    %1915 = vmatpush1.xpose.msra.mxu0 0.0
    %1916 = vmatprep.subr.mxu0 0.0
    %1917 = vmatpush1.xpose.msra.mxu0 0.0
    %1918 = vmatprep.subr.mxu0 0.0
    %1919 = vmatpush1.xpose.msra.mxu0 0.0
    %1920 = vmatprep.subr.mxu0 0.0
    %1921 = vmatpush1.xpose.msra.mxu0 0.0
    %1922 = vmatprep.subr.mxu0 0.0
    %1923 = vmatpush1.xpose.msra.mxu0 0.0
    %1924 = vmatprep.subr.mxu0 0.0
    %1925 = vmatpush1.xpose.msra.mxu0 0.0
    %1926 = vmatprep.subr.mxu0 0.0
    %1927 = vmatpush1.xpose.msra.mxu0 0.0
    %1928 = vmatprep.subr.mxu0 0.0
    %1929 = vmatpush1.xpose.msra.mxu0 0.0
    %1930 = vmatprep.subr.mxu0 0.0
    %1931 = vmatpush1.xpose.msra.mxu0 0.0
    %1932 = vmatprep.subr.mxu0 0.0
    %1933 = vmatpush1.xpose.msra.mxu0 0.0
    %1934 = vmatprep.subr.mxu0 0.0
    %1935 = vmatpush1.xpose.msra.mxu0 0.0
    %1936 = vmatprep.subr.mxu0 0.0
    %1937 = vmatpush1.xpose.msra.mxu0 0.0
    %1938 = vmatprep.subr.mxu0 0.0
    %1939 = vmatpush1.xpose.msra.mxu0 0.0
    %1940 = vmatprep.subr.mxu0 0.0
    %1941 = vmatpush1.xpose.msra.mxu0 0.0
    %1942 = vmatprep.subr.mxu0 0.0
    %1943 = vmatpush1.xpose.msra.mxu0 0.0
    %1944 = vmatprep.subr.mxu0 0.0
    %1945 = vmatpush1.xpose.msra.mxu0 0.0
    %1946 = vmatprep.subr.mxu0 0.0
    %1947 = vmatpush1.xpose.msra.mxu0 0.0
    %1948 = vmatprep.subr.mxu0 0.0
    %1949 = vmatpush1.xpose.msra.mxu0 0.0
    %1950 = vmatprep.subr.mxu0 0.0
    %1951 = vmatpush1.xpose.msra.mxu0 0.0
    %1952 = vmatprep.subr.mxu0 0.0
    %1953 = vmatpush1.xpose.msra.mxu0 0.0
    %1954 = vmatprep.subr.mxu0 0.0
    %1955 = vmatpush1.xpose.msra.mxu0 0.0
    %1956 = vmatprep.subr.mxu0 0.0
    %1957 = vmatpush1.xpose.msra.mxu0 0.0
    %1958 = vmatprep.subr.mxu0 0.0
    %1959 = vmatpush1.xpose.msra.mxu0 0.0
    %1960 = vmatprep.subr.mxu0 0.0
    %1961 = vmatpush1.xpose.msra.mxu0 0.0
    %1962 = vmatprep.subr.mxu0 0.0
    %1963 = vmatpush1.xpose.msra.mxu0 0.0
    %1964 = vmatprep.subr.mxu0 0.0
    %1965 = vmatpush1.xpose.msra.mxu0 0.0
    %1966 = vmatprep.mubr.f32.mxu0 0.0
    %1967 = vmatmul.mubr.f32.gmra.mrb[0].mxu0 %v1898
    %v1968 = vpop.f32.mrb[0].mxu0
    %v1969 = vadd.f32 0.0, %v1968
    %v1970 = vpop.f32.mrb[0].mxu0
    %1971 = vdwg.mxu0
    %1972 = vrot.lane.b32.xlu0 %v132, 104
    %v1973 = vpop.permute.xlu0 %1972
    %1974 = vrot.lane.b32.xlu0 %v1563, 120
    %v1975 = vpop.permute.xlu0 %1974
    %v1976 = vsel %vm147, %v1973, 0
    %v1978 = vsel %vm147, %v1975, 0
    %1980 = vmatprep.subr.mxu0 0.0
    %1981 = vmatpush1.xpose.msra.mxu0 %v1978
    %1982 = vmatprep.subr.mxu0 0.0
    %1983 = vmatpush1.xpose.msra.mxu0 0.0
    %1984 = vmatprep.subr.mxu0 0.0
    %1985 = vmatpush1.xpose.msra.mxu0 0.0
    %1986 = vmatprep.subr.mxu0 0.0
    %1987 = vmatpush1.xpose.msra.mxu0 0.0
    %1988 = vmatprep.subr.mxu0 0.0
    %1989 = vmatpush1.xpose.msra.mxu0 0.0
    %1990 = vmatprep.subr.mxu0 0.0
    %1991 = vmatpush1.xpose.msra.mxu0 0.0
    %1992 = vmatprep.subr.mxu0 0.0
    %1993 = vmatpush1.xpose.msra.mxu0 0.0
    %1994 = vmatprep.subr.mxu0 0.0
    %1995 = vmatpush1.xpose.msra.mxu0 0.0
    %1996 = vmatprep.subr.mxu0 0.0
    %1997 = vmatpush1.xpose.msra.mxu0 0.0
    %1998 = vmatprep.subr.mxu0 0.0
    %1999 = vmatpush1.xpose.msra.mxu0 0.0
    %2000 = vmatprep.subr.mxu0 0.0
    %2001 = vmatpush1.xpose.msra.mxu0 0.0
    %2002 = vmatprep.subr.mxu0 0.0
    %2003 = vmatpush1.xpose.msra.mxu0 0.0
    %2004 = vmatprep.subr.mxu0 0.0
    %2005 = vmatpush1.xpose.msra.mxu0 0.0
    %2006 = vmatprep.subr.mxu0 0.0
    %2007 = vmatpush1.xpose.msra.mxu0 0.0
    %2008 = vmatprep.subr.mxu0 0.0
    %2009 = vmatpush1.xpose.msra.mxu0 0.0
    %2010 = vmatprep.subr.mxu0 0.0
    %2011 = vmatpush1.xpose.msra.mxu0 0.0
    %2012 = vmatprep.subr.mxu0 0.0
    %2013 = vmatpush1.xpose.msra.mxu0 0.0
    %2014 = vmatprep.subr.mxu0 0.0
    %2015 = vmatpush1.xpose.msra.mxu0 0.0
    %2016 = vmatprep.subr.mxu0 0.0
    %2017 = vmatpush1.xpose.msra.mxu0 0.0
    %2018 = vmatprep.subr.mxu0 0.0
    %2019 = vmatpush1.xpose.msra.mxu0 0.0
    %2020 = vmatprep.subr.mxu0 0.0
    %2021 = vmatpush1.xpose.msra.mxu0 0.0
    %2022 = vmatprep.subr.mxu0 0.0
    %2023 = vmatpush1.xpose.msra.mxu0 0.0
    %2024 = vmatprep.subr.mxu0 0.0
    %2025 = vmatpush1.xpose.msra.mxu0 0.0
    %2026 = vmatprep.subr.mxu0 0.0
    %2027 = vmatpush1.xpose.msra.mxu0 0.0
    %2028 = vmatprep.subr.mxu0 0.0
    %2029 = vmatpush1.xpose.msra.mxu0 0.0
    %2030 = vmatprep.subr.mxu0 0.0
    %2031 = vmatpush1.xpose.msra.mxu0 0.0
    %2032 = vmatprep.subr.mxu0 0.0
    %2033 = vmatpush1.xpose.msra.mxu0 0.0
    %2034 = vmatprep.subr.mxu0 0.0
    %2035 = vmatpush1.xpose.msra.mxu0 0.0
    %2036 = vmatprep.subr.mxu0 0.0
    %2037 = vmatpush1.xpose.msra.mxu0 0.0
    %2038 = vmatprep.subr.mxu0 0.0
    %2039 = vmatpush1.xpose.msra.mxu0 0.0
    %2040 = vmatprep.subr.mxu0 0.0
    %2041 = vmatpush1.xpose.msra.mxu0 0.0
    %2042 = vmatprep.subr.mxu0 0.0
    %2043 = vmatpush1.xpose.msra.mxu0 0.0
    %2044 = vmatprep.mubr.f32.mxu0 0.0
    %2045 = vmatmul.mubr.f32.gmra.mrb[0].mxu0 %v1976
    %v2046 = vpop.f32.mrb[0].mxu0
    %v2047 = vadd.f32 0.0, %v2046
    %v2048 = vpop.f32.mrb[0].mxu0
    %2049 = vdwg.mxu0
    %v2050 = vsel %vm1716, %v1969, -inf
    %2051 = vmax.xlane.f32.xlu0 %v2050
    %v2052 = vpop.xlane.xlu0 %2051
    %v2053 = vsel %vm1716, %v2047, -inf
    %2054 = vmax.xlane.f32.xlu0 %v2053
    %v2055 = vpop.xlane.xlu0 %2054
    %v2056 = vsub.f32 %v1969, %v2052
    %v2057 = vsub.f32 %v2047, %v2055
    %v2058 = vmul.f32 %v2056, 1.442695
    %v2059 = vpow.pop %v2058
    %v2060 = vmul.f32 %v2057, 1.442695
    %v2061 = vpow.pop %v2060
    %v2062 = vsel %vm1716, %v2059, 0.0
    %2063 = vadd.xlane.f32.xlu0 %v2062
    %v2064 = vpop.xlane.xlu0 %2063
    %v2065 = vsel %vm1716, %v2061, 0.0
    %2066 = vadd.xlane.f32.xlu0 %v2065
    %v2067 = vpop.xlane.xlu0 %2066
    %v2068 = vrcp.pop %v2064
    %v2069 = vrcp.pop %v2067
    %v2070 = vmul.f32 %v2059, %v2068
    %v2071 = vmul.f32 %v2061, %v2069
    %v2072 = vadd.f32 %v1737, %v2070
    %v2073 = vadd.f32 %v1738, %v2071
    %2074 = vrot.lane.b32.xlu0 %v1559, 104
    %v2075 = vpop.permute.xlu0 %2074
    %v2077 = vsel %vm1716, %v2070, 0
    %v2079 = vsel %vm1744, %v2075, 0
    %2081 = vmatprep.subr.mxu0 0.0
    %2082 = vmatpush1.msra.mxu0 %v2079
    %2083 = vmatprep.subr.mxu0 0.0
    %2084 = vmatpush1.msra.mxu0 0.0
    %2085 = vmatprep.subr.mxu0 0.0
    %2086 = vmatpush1.msra.mxu0 0.0
    %2087 = vmatprep.subr.mxu0 0.0
    %2088 = vmatpush1.msra.mxu0 0.0
    %2089 = vmatprep.subr.mxu0 0.0
    %2090 = vmatpush1.msra.mxu0 0.0
    %2091 = vmatprep.subr.mxu0 0.0
    %2092 = vmatpush1.msra.mxu0 0.0
    %2093 = vmatprep.subr.mxu0 0.0
    %2094 = vmatpush1.msra.mxu0 0.0
    %2095 = vmatprep.subr.mxu0 0.0
    %2096 = vmatpush1.msra.mxu0 0.0
    %2097 = vmatprep.subr.mxu0 0.0
    %2098 = vmatpush1.msra.mxu0 0.0
    %2099 = vmatprep.subr.mxu0 0.0
    %2100 = vmatpush1.msra.mxu0 0.0
    %2101 = vmatprep.subr.mxu0 0.0
    %2102 = vmatpush1.msra.mxu0 0.0
    %2103 = vmatprep.subr.mxu0 0.0
    %2104 = vmatpush1.msra.mxu0 0.0
    %2105 = vmatprep.subr.mxu0 0.0
    %2106 = vmatpush1.msra.mxu0 0.0
    %2107 = vmatprep.subr.mxu0 0.0
    %2108 = vmatpush1.msra.mxu0 0.0
    %2109 = vmatprep.subr.mxu0 0.0
    %2110 = vmatpush1.msra.mxu0 0.0
    %2111 = vmatprep.subr.mxu0 0.0
    %2112 = vmatpush1.msra.mxu0 0.0
    %2113 = vmatprep.subr.mxu0 0.0
    %2114 = vmatpush1.msra.mxu0 0.0
    %2115 = vmatprep.subr.mxu0 0.0
    %2116 = vmatpush1.msra.mxu0 0.0
    %2117 = vmatprep.subr.mxu0 0.0
    %2118 = vmatpush1.msra.mxu0 0.0
    %2119 = vmatprep.subr.mxu0 0.0
    %2120 = vmatpush1.msra.mxu0 0.0
    %2121 = vmatprep.subr.mxu0 0.0
    %2122 = vmatpush1.msra.mxu0 0.0
    %2123 = vmatprep.subr.mxu0 0.0
    %2124 = vmatpush1.msra.mxu0 0.0
    %2125 = vmatprep.subr.mxu0 0.0
    %2126 = vmatpush1.msra.mxu0 0.0
    %2127 = vmatprep.subr.mxu0 0.0
    %2128 = vmatpush1.msra.mxu0 0.0
    %2129 = vmatprep.subr.mxu0 0.0
    %2130 = vmatpush1.msra.mxu0 0.0
    %2131 = vmatprep.subr.mxu0 0.0
    %2132 = vmatpush1.msra.mxu0 0.0
    %2133 = vmatprep.subr.mxu0 0.0
    %2134 = vmatpush1.msra.mxu0 0.0
    %2135 = vmatprep.subr.mxu0 0.0
    %2136 = vmatpush1.msra.mxu0 0.0
    %2137 = vmatprep.subr.mxu0 0.0
    %2138 = vmatpush1.msra.mxu0 0.0
    %2139 = vmatprep.subr.mxu0 0.0
    %2140 = vmatpush1.msra.mxu0 0.0
    %2141 = vmatprep.subr.mxu0 0.0
    %2142 = vmatpush1.msra.mxu0 0.0
    %2143 = vmatprep.subr.mxu0 0.0
    %2144 = vmatpush1.msra.mxu0 0.0
    %2145 = vmatprep.mubr.f32.mxu0 0.0
    %2146 = vmatmul.mubr.f32.gmra.mrb[0].mxu0 %v2077
    %v2147 = vpop.f32.mrb[0].mxu0
    %v2148 = vadd.f32 0.0, %v2147
    %v2149 = vpop.f32.mrb[0].mxu0
    %2150 = vdwg.mxu0
    %2151 = vrot.lane.b32.xlu0 %v1563, 104
    %v2152 = vpop.permute.xlu0 %2151
    %v2154 = vsel %vm1716, %v2071, 0
    %v2156 = vsel %vm1744, %v2152, 0
    %2158 = vmatprep.subr.mxu0 0.0
    %2159 = vmatpush1.msra.mxu0 %v2156
    %2160 = vmatprep.subr.mxu0 0.0
    %2161 = vmatpush1.msra.mxu0 0.0
    %2162 = vmatprep.subr.mxu0 0.0
    %2163 = vmatpush1.msra.mxu0 0.0
    %2164 = vmatprep.subr.mxu0 0.0
    %2165 = vmatpush1.msra.mxu0 0.0
    %2166 = vmatprep.subr.mxu0 0.0
    %2167 = vmatpush1.msra.mxu0 0.0
    %2168 = vmatprep.subr.mxu0 0.0
    %2169 = vmatpush1.msra.mxu0 0.0
    %2170 = vmatprep.subr.mxu0 0.0
    %2171 = vmatpush1.msra.mxu0 0.0
    %2172 = vmatprep.subr.mxu0 0.0
    %2173 = vmatpush1.msra.mxu0 0.0
    %2174 = vmatprep.subr.mxu0 0.0
    %2175 = vmatpush1.msra.mxu0 0.0
    %2176 = vmatprep.subr.mxu0 0.0
    %2177 = vmatpush1.msra.mxu0 0.0
    %2178 = vmatprep.subr.mxu0 0.0
    %2179 = vmatpush1.msra.mxu0 0.0
    %2180 = vmatprep.subr.mxu0 0.0
    %2181 = vmatpush1.msra.mxu0 0.0
    %2182 = vmatprep.subr.mxu0 0.0
    %2183 = vmatpush1.msra.mxu0 0.0
    %2184 = vmatprep.subr.mxu0 0.0
    %2185 = vmatpush1.msra.mxu0 0.0
    %2186 = vmatprep.subr.mxu0 0.0
    %2187 = vmatpush1.msra.mxu0 0.0
    %2188 = vmatprep.subr.mxu0 0.0
    %2189 = vmatpush1.msra.mxu0 0.0
    %2190 = vmatprep.subr.mxu0 0.0
    %2191 = vmatpush1.msra.mxu0 0.0
    %2192 = vmatprep.subr.mxu0 0.0
    %2193 = vmatpush1.msra.mxu0 0.0
    %2194 = vmatprep.subr.mxu0 0.0
    %2195 = vmatpush1.msra.mxu0 0.0
    %2196 = vmatprep.subr.mxu0 0.0
    %2197 = vmatpush1.msra.mxu0 0.0
    %2198 = vmatprep.subr.mxu0 0.0
    %2199 = vmatpush1.msra.mxu0 0.0
    %2200 = vmatprep.subr.mxu0 0.0
    %2201 = vmatpush1.msra.mxu0 0.0
    %2202 = vmatprep.subr.mxu0 0.0
    %2203 = vmatpush1.msra.mxu0 0.0
    %2204 = vmatprep.subr.mxu0 0.0
    %2205 = vmatpush1.msra.mxu0 0.0
    %2206 = vmatprep.subr.mxu0 0.0
    %2207 = vmatpush1.msra.mxu0 0.0
    %2208 = vmatprep.subr.mxu0 0.0
    %2209 = vmatpush1.msra.mxu0 0.0
    %2210 = vmatprep.subr.mxu0 0.0
    %2211 = vmatpush1.msra.mxu0 0.0
    %2212 = vmatprep.subr.mxu0 0.0
    %2213 = vmatpush1.msra.mxu0 0.0
    %2214 = vmatprep.subr.mxu0 0.0
    %2215 = vmatpush1.msra.mxu0 0.0
    %2216 = vmatprep.subr.mxu0 0.0
    %2217 = vmatpush1.msra.mxu0 0.0
    %2218 = vmatprep.subr.mxu0 0.0
    %2219 = vmatpush1.msra.mxu0 0.0
    %2220 = vmatprep.subr.mxu0 0.0
    %2221 = vmatpush1.msra.mxu0 0.0
    %2222 = vmatprep.mubr.f32.mxu0 0.0
    %2223 = vmatmul.mubr.f32.gmra.mrb[0].mxu0 %v2154
    %v2224 = vpop.f32.mrb[0].mxu0
    %v2225 = vadd.f32 0.0, %v2224
    %v2226 = vpop.f32.mrb[0].mxu0
    %2227 = vdwg.mxu0
    %2230 = vrot.lane.b32.xlu0 %v2148, 8
    %v2231 = vpop.permute.xlu0 %2230
    %2232 = vrot.lane.b32.xlu0 %v2225, 8
    %v2233 = vpop.permute.xlu0 %2232
    %v2236 = vsel %vm147, %v1814, %v2231
    %v2237 = vsel %vm147, %v1891, %v2233
    %v2238 = vmul.f32 %v2072, 0.5
    %v2239 = vmul.f32 %v2073, 0.5
    %v2243 = vcombine.low %v818, %v819
    %2244 = vrot.lane.b32.xlu0 %v2243, 16
    %v2245 = vpop.permute.xlu0 %2244
    %v2247 = vsel %vm50, %v1480, %v2245
    %vm2248 = vcmask 195584
    %v2249 = vsel %vm2248, %v2247, 0.0
    %2250 = vst [vmem:[%s3] sm:$0xff] %v2249
    %2253 = vrot.lane.b32.xlu0 %v2238, 16
    %v2254 = vpop.permute.xlu0 %2253
    %2255 = vrot.lane.b32.xlu0 %v2239, 16
    %v2256 = vpop.permute.xlu0 %2255
    %v2259 = vsel %vm50, %v2236, %v2254
    %v2260 = vsel %vm50, %v2237, %v2256
    %vm2261 = vcmask 162816
    %v2262 = vsel %vm2261, %v2259, 0.0
    %v2263 = vsel %vm2261, %v2260, 0.0
    %2264 = vst [vmem:[%s3 + $0x8] sm:$0xff] %v2262
    %2265 = vst [vmem:[%s3 + $0x10] sm:$0xff] %v2263
    // Predicated region
    $region18: #{relational_memory_forward.1} parent=1 // pred_check
      _
    $region19: #{relational_memory_forward.1} parent=1 // pred_check_branch
      %2267 = sbr.rel (0) target = $region21
    $region20: #{relational_memory_forward.1} parent=1 // pred_region
      _
    $region21: #{relational_memory_forward.1} parent=1 // pred_fallthru
      _
    // Predicated region
    $region22: #{relational_memory_forward.1} parent=1 // pred_check
      _
    $region23: #{relational_memory_forward.1} parent=1 // pred_check_branch
      %2269 = sbr.rel (0) target = $region25
    $region24: #{relational_memory_forward.1} parent=1 // pred_region
      _
    $region25: #{relational_memory_forward.1} parent=1 // pred_fallthru
      _
    %2270 = vsyncpa [#allocation3], 1

</llo_original>
